<compile_context>
chip_gen: v5e
topology: v5e:2x2
jax: 0.10.0
libtpu: 0.0.40
codegen_flags: <defaults>
</compile_context>

<pallas_src>
import jax
import jax.numpy as jnp
from jax import lax
from jax.experimental import pallas as pl
from jax.experimental.pallas import tpu as pltpu

D = 128          # embedding / model dim  (== module-level constant `d`)
DF = 128         # ffn hidden width (== d in the PyTorch module)
S = 8            # seq_len
H = 4            # attention heads
HD = D // H      # head dim
EX_TOTAL = 50    # exercise vocabulary size
EPS = 1e-5       # nn.LayerNorm default eps
TB_MAX = 32      # sequences per grid step cap -> M = TB*S up to 256 MXU rows.
                 # (spill-safe on v5e; TODO(synk): raise to 64 on v6e/v7x for
                 #  very large batches.)

# bias-stack row indices (wrapper and kernel must agree)
_BQ, _BAQ, _BK, _BV, _BO, _G1, _BE1, _B1, _B2, _G2, _BE2, _WOUT = range(12)


def _layer_norm(x, gamma, beta):
    m = jnp.mean(x, axis=-1, keepdims=True)
    v = jnp.mean((x - m) ** 2, axis=-1, keepdims=True)
    return (x - m) * lax.rsqrt(v + EPS) * gamma + beta


def _make_kernel(TB):
    M = TB * S

    def kernel(x_in_ref, x_ex_ref, w_ref, b_ref, bout_ref, out_ref):
        f32 = jnp.float32
        bf16 = jnp.bfloat16

        # f32 activation blocks; S == 8 makes the merge reshape layout-free.
        x_in = x_in_ref[...].reshape(M, D)
        x_ex = x_ex_ref[...].reshape(M, D)
        x_in_b = x_in.astype(bf16)
        x_ex_b = x_ex.astype(bf16)

        def brow(i):                       # (1, D) f32 bias / LN row
            return b_ref[i:i + 1, :]

        # projections: bf16 operands, f32 accumulation, M rows on the MXU
        q = jnp.dot(x_ex_b, w_ref[0], preferred_element_type=f32) + brow(_BQ)
        qp = jnp.dot(q.astype(bf16), w_ref[1], preferred_element_type=f32) + brow(_BAQ)
        kp = jnp.dot(x_in_b, w_ref[2], preferred_element_type=f32) + brow(_BK)
        vp = jnp.dot(x_in_b, w_ref[3], preferred_element_type=f32) + brow(_BV)

        # causal additive bias, built once (diagonal always unmasked -> no
        # fully-masked row, so the max-subtraction below stays finite).
        row = lax.broadcasted_iota(jnp.int32, (S, S), 0)
        col = lax.broadcasted_iota(jnp.int32, (S, S), 1)
        neg = jnp.where(col > row, f32(-1e30), f32(0.0))[None]     # (1, S, S)

        wo = w_ref[4]                                              # (D, D) bf16
        attn = brow(_BO)                                           # bo, broadcasts to (M, D)
        # static unroll over heads; each head's matmuls are TB-batched.
        # TODO(synk): a single (TB*H)-batched einsum would remove the 32-lane
        # qp/kp/vp slices, but needs a 4-D transpose Mosaic may not lower well.
        for h in range(H):
            sl = slice(h * HD, (h + 1) * HD)
            qh = qp[:, sl].astype(bf16).reshape(TB, S, HD)
            kh = kp[:, sl].astype(bf16).reshape(TB, S, HD)
            vh = vp[:, sl].astype(bf16).reshape(TB, S, HD)
            s = jnp.einsum('bqd,bkd->bqk', qh, kh,
                           preferred_element_type=f32)             # scale pre-folded
            s = s + neg
            s = s - jnp.max(s, axis=-1, keepdims=True)
            pr = jnp.exp(s)
            pr = pr * pl.reciprocal(jnp.sum(pr, axis=-1, keepdims=True), approx=True)
            ctx = jnp.einsum('bqk,bkd->bqd', pr.astype(bf16), vh,
                             preferred_element_type=f32)
            # out-projection fused per head: sublane-dim weight slice + MXU
            # accumulate (no lane-dim concat of head contexts).
            attn = attn + jnp.dot(ctx.reshape(M, HD).astype(bf16), wo[sl, :],
                                  preferred_element_type=f32)

        # residual (with query projection) + layer norm 1
        y1 = _layer_norm(q + attn, brow(_G1), brow(_BE1))

        # feed-forward (dropout is identity in eval mode)
        h1 = jnp.maximum(
            jnp.dot(y1.astype(bf16), w_ref[5], preferred_element_type=f32) + brow(_B1),
            0.0)
        h2 = jnp.dot(h1.astype(bf16), w_ref[6],
                     preferred_element_type=f32) + brow(_B2)
        y2 = _layer_norm(h2 + y1, brow(_G2), brow(_BE2))

        # output head as wout^T @ y2^T (contract both last dims) so M lands on
        # lanes -> one lane-dense store.  Tiny matmul, kept in f32.
        logit = lax.dot_general(b_ref[_WOUT:_WOUT + 1, :], y2,
                                (((1,), (1,)), ((), ())),
                                preferred_element_type=f32) + bout_ref[...]
        out_ref[0] = jax.nn.sigmoid(logit)                          # (1, M)

    return kernel


def sakt_forward(input_in, input_ex, p):
    B = input_in.shape[0]
    # embedding gathers stay in JAX glue
    # TODO(synk): for large B, pass input_in/input_ex via num_scalar_prefetch=2
    # and gather from VMEM-resident embedding tables inside the kernel.
    x_in = p['embd_in'][input_in] + p['embd_pos'][None, :, :]     # (B, S, D) f32
    x_ex = p['embd_ex'][input_ex]                                 # (B, S, D) f32

    # TB: up to 32 sequences per step (M = TB*S <= 256 MXU rows), but capped at
    # ceil(B/2) so the grid has >= 2 steps whenever B >= 2 (v7x megacore).
    TB = max(1, min(TB_MAX, pl.cdiv(B, 2)))
    G = pl.cdiv(B, TB)
    Bp = G * TB
    M = TB * S
    if Bp != B:
        pad = ((0, Bp - B), (0, 0), (0, 0))
        x_in = jnp.pad(x_in, pad)     # zero rows; LayerNorm stays finite via EPS>0
        x_ex = jnp.pad(x_ex, pad)

    # host-side algebraic fusions (done once, outside the kernel)
    scale = 1.0 / (HD ** 0.5)
    waq_s = p['waq'] * scale
    baq_s = p['baq'] * scale
    wk_f = p['wk'] @ p['wak']
    bk_f = p['bk'] @ p['wak'] + p['bak']
    wv_f = p['wv'] @ p['wav']
    bv_f = p['bv'] @ p['wav'] + p['bav']

    # consolidated weight stack (bf16) and bias/LN/wout stack (f32)
    w_stack = jnp.stack([p['wq'], waq_s, wk_f, wv_f,
                         p['wo'], p['w1'], p['w2']]).astype(jnp.bfloat16)   # (7, D, D)
    b_stack = jnp.concatenate([p['bq'], baq_s, bk_f, bv_f, p['bo'],
                               p['g1'], p['be1'], p['b1'], p['b2'],
                               p['g2'], p['be2'], p['wout'].T],
                              axis=0).astype(jnp.float32)                    # (12, D)

    act = pl.BlockSpec((TB, S, D), lambda b: (b, 0, 0))
    in_specs = [act, act,
                pl.BlockSpec((7, D, D), lambda b: (0, 0, 0)),
                pl.BlockSpec((12, D), lambda b: (0, 0)),
                pl.BlockSpec((1, 1), lambda b: (0, 0))]

    # advisory cost estimate so XLA schedules surrounding ops sensibly
    flops_step = (7 * 2 * M * D * D                 # projections + out-proj + ffn
                  + 2 * (2 * TB * H * S * S * HD)   # attention score + context
                  + 2 * M * D)                      # output head
    trans_step = TB * H * S * S + 4 * M             # exp + recip + rsqrt + sigmoid
    bytes_step = 2 * M * D * 4 + M * 4 + 7 * D * D * 2 + 12 * D * 4 + 4
    cost = pl.CostEstimate(flops=G * flops_step,
                           transcendentals=G * trans_step,
                           bytes_accessed=G * bytes_step)

    out = pl.pallas_call(
        _make_kernel(TB),
        out_shape=jax.ShapeDtypeStruct((G, 1, M), jnp.float32),
        grid_spec=pltpu.PrefetchScalarGridSpec(
            num_scalar_prefetch=0,
            grid=(G,),
            in_specs=in_specs,
            out_specs=pl.BlockSpec((1, 1, M), lambda b: (b, 0, 0))),
        compiler_params=pltpu.CompilerParams(dimension_semantics=("parallel",)),
        cost_estimate=cost,
    )(x_in, x_ex, w_stack, b_stack, p['bout'])

    return out.reshape(Bp, S, 1)[:B]


def sakt_reference(input_in, input_ex, p):
    """Pure-JAX f32 reference of the PyTorch forward (eval mode), unfused weights."""
    B = input_in.shape[0]
    x_in = p['embd_in'][input_in] + p['embd_pos'][None]
    x_ex = p['embd_ex'][input_ex]
    v = x_in @ p['wv'] + p['bv']
    k = x_in @ p['wk'] + p['bk']
    q = x_ex @ p['wq'] + p['bq']
    qp = (q @ p['waq'] + p['baq']).reshape(B, S, H, HD)
    kp = (k @ p['wak'] + p['bak']).reshape(B, S, H, HD)
    vp = (v @ p['wav'] + p['bav']).reshape(B, S, H, HD)
    scores = jnp.einsum('bqhd,bkhd->bhqk', qp, kp) / (HD ** 0.5)
    mask = jnp.triu(jnp.ones((S, S), bool), k=1)
    scores = jnp.where(mask[None, None], -1e30, scores)
    prob = jax.nn.softmax(scores, axis=-1)
    ctx = jnp.einsum('bhqk,bkhd->bqhd', prob, vp).reshape(B, S, D)
    attn = ctx @ p['wo'] + p['bo']
    y1 = _layer_norm(q + attn, p['g1'], p['be1'])
    h1 = jnp.maximum(y1 @ p['w1'] + p['b1'], 0.0)
    h2 = h1 @ p['w2'] + p['b2']
    y2 = _layer_norm(h2 + y1, p['g2'], p['be2'])
    return jax.nn.sigmoid(y2 @ p['wout'] + p['bout'])


def init_params(key):
    keys = iter(jax.random.split(key, 32))

    def nrm(shape, scale=0.05):
        return jax.random.normal(next(keys), shape, jnp.float32) * scale

    p = {}
    p['embd_in'] = nrm((2 * EX_TOTAL + 1, D))
    p['embd_ex'] = nrm((EX_TOTAL + 1, D))
    p['embd_pos'] = nrm((S, D))
    for name in ['wv', 'wk', 'wq', 'waq', 'wak', 'wav', 'wo']:
        p[name] = nrm((D, D))
    for name in ['bv', 'bk', 'bq', 'baq', 'bak', 'bav', 'bo']:
        p[name] = nrm((1, D))
    p['g1'] = jnp.ones((1, D), jnp.float32)
    p['be1'] = jnp.zeros((1, D), jnp.float32)
    p['g2'] = jnp.ones((1, D), jnp.float32)
    p['be2'] = jnp.zeros((1, D), jnp.float32)
    p['w1'] = nrm((D, DF))
    p['b1'] = nrm((1, DF))
    p['w2'] = nrm((DF, D))
    p['b2'] = nrm((1, D))
    p['wout'] = nrm((D, 1))
    p['bout'] = nrm((1, 1))
    return p


if __name__ == "__main__":
    key = jax.random.PRNGKey(0)
    pkey, k1, k2 = jax.random.split(key, 3)
    params = init_params(pkey)

    B = 2
    input_in = jax.random.randint(k1, (B, S), 0, 2 * EX_TOTAL + 1, dtype=jnp.int32)
    input_ex = jax.random.randint(k2, (B, S), 0, EX_TOTAL + 1, dtype=jnp.int32)

    out = sakt_forward(input_in, input_ex, params)
    out = jax.block_until_ready(out)

    ref = sakt_reference(input_in, input_ex, params)
    assert out.shape == (B, S, 1), out.shape
    max_err = float(jnp.max(jnp.abs(out - ref)))
    # tolerance absorbs bf16 matmul operands, fused-weight associativity and the
    # EUP approx-reciprocal in the softmax; still far below any structural bug.
    assert jnp.allclose(out, ref, rtol=2e-2, atol=2e-2), max_err

    print("KERNEL_OK")
</pallas_src>

<mosaic_0001>
module attributes {stable_mosaic.version = 11 : i64} {
  func.func @kernel(%arg0: i32, %arg1: memref<1x8x128xf32, #tpu.memory_space<vmem>>, %arg2: memref<1x8x128xf32, #tpu.memory_space<vmem>>, %arg3: memref<7x128x128xbf16, #tpu.memory_space<vmem>>, %arg4: memref<12x128xf32, #tpu.memory_space<vmem>>, %arg5: memref<1x1xf32, #tpu.memory_space<vmem>>, %arg6: memref<1x1x8xf32, #tpu.memory_space<vmem>>) attributes {dimension_semantics = [#tpu.dimension_semantics<parallel>], iteration_bounds = array<i64: 2>, scalar_prefetch = 0 : i64, scratch_operands = 0 : i64, tpu.core_type = #tpu.core_type<tc>, window_params = [{transform_indices = @transform_0, window_bounds = array<i64: 1, 8, 128>}, {transform_indices = @transform_1, window_bounds = array<i64: 1, 8, 128>}, {pipeline_mode = #tpu.pipeline_mode<synchronous>, transform_indices = @transform_2, window_bounds = array<i64: 7, 128, 128>}, {pipeline_mode = #tpu.pipeline_mode<synchronous>, transform_indices = @transform_3, window_bounds = array<i64: 12, 128>}, {pipeline_mode = #tpu.pipeline_mode<synchronous>, transform_indices = @transform_4, window_bounds = array<i64: 1, 1>}, {transform_indices = @transform_5, window_bounds = array<i64: 1, 1, 8>}]} {
    %c0 = arith.constant 0 : index
    %c0_0 = arith.constant 0 : index
    %c0_1 = arith.constant 0 : index
    %0 = vector.load %arg1[%c0, %c0_0, %c0_1] : memref<1x8x128xf32, #tpu.memory_space<vmem>>, vector<1x8x128xf32>
    %1 = vector.shape_cast %0 : vector<1x8x128xf32> to vector<8x128xf32>
    %c0_2 = arith.constant 0 : index
    %c0_3 = arith.constant 0 : index
    %c0_4 = arith.constant 0 : index
    %2 = vector.load %arg2[%c0_2, %c0_3, %c0_4] : memref<1x8x128xf32, #tpu.memory_space<vmem>>, vector<1x8x128xf32>
    %3 = vector.shape_cast %2 : vector<1x8x128xf32> to vector<8x128xf32>
    %4 = arith.truncf %1 : vector<8x128xf32> to vector<8x128xbf16>
    %5 = arith.truncf %3 : vector<8x128xf32> to vector<8x128xbf16>
    %c0_5 = arith.constant 0 : index
    %c0_6 = arith.constant 0 : index
    %c0_7 = arith.constant 0 : index
    %6 = vector.load %arg3[%c0_5, %c0_6, %c0_7] : memref<7x128x128xbf16, #tpu.memory_space<vmem>>, vector<1x128x128xbf16>
    %7 = vector.shape_cast %6 : vector<1x128x128xbf16> to vector<128x128xbf16>
    %cst = arith.constant dense<0.000000e+00> : vector<8x128xf32>
    %8 = tpu.matmul %5, %7, %cst {dimension_numbers = #tpu.dot_dimension_numbers<[1], [0], [0], [1], [0, 0, 1, 1], [], []>} : vector<8x128xbf16>, vector<128x128xbf16>, vector<8x128xf32> -> vector<8x128xf32>
    %c0_8 = arith.constant 0 : index
    %c0_9 = arith.constant 0 : index
    %9 = vector.load %arg4[%c0_8, %c0_9] : memref<12x128xf32, #tpu.memory_space<vmem>>, vector<1x128xf32>
    %10 = vector.broadcast %9 : vector<1x128xf32> to vector<8x128xf32>
    %11 = arith.addf %8, %10 : vector<8x128xf32>
    %12 = arith.truncf %11 : vector<8x128xf32> to vector<8x128xbf16>
    %c1 = arith.constant 1 : index
    %c0_10 = arith.constant 0 : index
    %c0_11 = arith.constant 0 : index
    %13 = vector.load %arg3[%c1, %c0_10, %c0_11] : memref<7x128x128xbf16, #tpu.memory_space<vmem>>, vector<1x128x128xbf16>
    %14 = vector.shape_cast %13 : vector<1x128x128xbf16> to vector<128x128xbf16>
    %cst_12 = arith.constant dense<0.000000e+00> : vector<8x128xf32>
    %15 = tpu.matmul %12, %14, %cst_12 {dimension_numbers = #tpu.dot_dimension_numbers<[1], [0], [0], [1], [0, 0, 1, 1], [], []>} : vector<8x128xbf16>, vector<128x128xbf16>, vector<8x128xf32> -> vector<8x128xf32>
    %c1_13 = arith.constant 1 : index
    %c0_14 = arith.constant 0 : index
    %16 = vector.load %arg4[%c1_13, %c0_14] : memref<12x128xf32, #tpu.memory_space<vmem>>, vector<1x128xf32>
    %17 = vector.broadcast %16 : vector<1x128xf32> to vector<8x128xf32>
    %18 = arith.addf %15, %17 : vector<8x128xf32>
    %c2 = arith.constant 2 : index
    %c0_15 = arith.constant 0 : index
    %c0_16 = arith.constant 0 : index
    %19 = vector.load %arg3[%c2, %c0_15, %c0_16] : memref<7x128x128xbf16, #tpu.memory_space<vmem>>, vector<1x128x128xbf16>
    %20 = vector.shape_cast %19 : vector<1x128x128xbf16> to vector<128x128xbf16>
    %cst_17 = arith.constant dense<0.000000e+00> : vector<8x128xf32>
    %21 = tpu.matmul %4, %20, %cst_17 {dimension_numbers = #tpu.dot_dimension_numbers<[1], [0], [0], [1], [0, 0, 1, 1], [], []>} : vector<8x128xbf16>, vector<128x128xbf16>, vector<8x128xf32> -> vector<8x128xf32>
    %c2_18 = arith.constant 2 : index
    %c0_19 = arith.constant 0 : index
    %22 = vector.load %arg4[%c2_18, %c0_19] : memref<12x128xf32, #tpu.memory_space<vmem>>, vector<1x128xf32>
    %23 = vector.broadcast %22 : vector<1x128xf32> to vector<8x128xf32>
    %24 = arith.addf %21, %23 : vector<8x128xf32>
    %c3 = arith.constant 3 : index
    %c0_20 = arith.constant 0 : index
    %c0_21 = arith.constant 0 : index
    %25 = vector.load %arg3[%c3, %c0_20, %c0_21] : memref<7x128x128xbf16, #tpu.memory_space<vmem>>, vector<1x128x128xbf16>
    %26 = vector.shape_cast %25 : vector<1x128x128xbf16> to vector<128x128xbf16>
    %cst_22 = arith.constant dense<0.000000e+00> : vector<8x128xf32>
    %27 = tpu.matmul %4, %26, %cst_22 {dimension_numbers = #tpu.dot_dimension_numbers<[1], [0], [0], [1], [0, 0, 1, 1], [], []>} : vector<8x128xbf16>, vector<128x128xbf16>, vector<8x128xf32> -> vector<8x128xf32>
    %c3_23 = arith.constant 3 : index
    %c0_24 = arith.constant 0 : index
    %28 = vector.load %arg4[%c3_23, %c0_24] : memref<12x128xf32, #tpu.memory_space<vmem>>, vector<1x128xf32>
    %29 = vector.broadcast %28 : vector<1x128xf32> to vector<8x128xf32>
    %30 = arith.addf %27, %29 : vector<8x128xf32>
    %31 = tpu.iota {dimensions = array<i32: 0>} : vector<8x8xi32>
    %32 = tpu.iota {dimensions = array<i32: 1>} : vector<8x8xi32>
    %33 = arith.cmpi sgt, %32, %31 : vector<8x8xi32>
    %cst_25 = arith.constant -1.000000e+30 : f32
    %cst_26 = arith.constant 0.000000e+00 : f32
    %34 = vector.broadcast %cst_25 : f32 to vector<8x8xf32>
    %35 = vector.broadcast %cst_26 : f32 to vector<8x8xf32>
    %36 = arith.select %33, %34, %35 : vector<8x8xi1>, vector<8x8xf32>
    %37 = vector.shape_cast %36 : vector<8x8xf32> to vector<1x8x8xf32>
    %c4 = arith.constant 4 : index
    %c0_27 = arith.constant 0 : index
    %c0_28 = arith.constant 0 : index
    %38 = vector.load %arg3[%c4, %c0_27, %c0_28] : memref<7x128x128xbf16, #tpu.memory_space<vmem>>, vector<1x128x128xbf16>
    %39 = vector.shape_cast %38 : vector<1x128x128xbf16> to vector<128x128xbf16>
    %c4_29 = arith.constant 4 : index
    %c0_30 = arith.constant 0 : index
    %40 = vector.load %arg4[%c4_29, %c0_30] : memref<12x128xf32, #tpu.memory_space<vmem>>, vector<1x128xf32>
    %41 = vector.extract_strided_slice %18 {offsets = [0, 0], sizes = [8, 32], strides = [1, 1]} : vector<8x128xf32> to vector<8x32xf32>
    %42 = arith.truncf %41 : vector<8x32xf32> to vector<8x32xbf16>
    %43 = vector.shape_cast %42 : vector<8x32xbf16> to vector<1x8x32xbf16>
    %44 = vector.extract_strided_slice %24 {offsets = [0, 0], sizes = [8, 32], strides = [1, 1]} : vector<8x128xf32> to vector<8x32xf32>
    %45 = arith.truncf %44 : vector<8x32xf32> to vector<8x32xbf16>
    %46 = vector.shape_cast %45 : vector<8x32xbf16> to vector<1x8x32xbf16>
    %47 = vector.extract_strided_slice %30 {offsets = [0, 0], sizes = [8, 32], strides = [1, 1]} : vector<8x128xf32> to vector<8x32xf32>
    %48 = arith.truncf %47 : vector<8x32xf32> to vector<8x32xbf16>
    %49 = vector.shape_cast %48 : vector<8x32xbf16> to vector<1x8x32xbf16>
    "tpu.trace_start"() <{level = 10 : i32, message = "bqd,bkd->bqk"}> : () -> ()
    %cst_31 = arith.constant dense<0.000000e+00> : vector<1x8x8xf32>
    %50 = tpu.matmul %43, %46, %cst_31 {dimension_numbers = #tpu.dot_dimension_numbers<[2], [2], [1], [1], [0, 0, 0, 1, 1, 1], [0], [0]>} : vector<1x8x32xbf16>, vector<1x8x32xbf16>, vector<1x8x8xf32> -> vector<1x8x8xf32>
    "tpu.trace_stop"() : () -> ()
    %51 = arith.addf %50, %37 : vector<1x8x8xf32>
    %cst_32 = arith.constant dense<0xFF800000> : vector<1x8xf32>
    %52 = vector.multi_reduction <maximumf>, %51, %cst_32 [2] : vector<1x8x8xf32> to vector<1x8xf32>
    %53 = vector.shape_cast %52 : vector<1x8xf32> to vector<1x8x1xf32>
    %54 = vector.broadcast %53 : vector<1x8x1xf32> to vector<1x8x8xf32>
    %55 = arith.subf %51, %54 : vector<1x8x8xf32>
    %56 = math.exp %55 : vector<1x8x8xf32>
    %cst_33 = arith.constant dense<0.000000e+00> : vector<1x8xf32>
    %57 = vector.multi_reduction <add>, %56, %cst_33 [2] : vector<1x8x8xf32> to vector<1x8xf32>
    %58 = vector.shape_cast %57 : vector<1x8xf32> to vector<1x8x1xf32>
    %59 = tpu.reciprocal %58 {approx = true} : vector<1x8x1xf32> -> vector<1x8x1xf32>
    %60 = vector.broadcast %59 : vector<1x8x1xf32> to vector<1x8x8xf32>
    %61 = arith.mulf %56, %60 : vector<1x8x8xf32>
    %62 = arith.truncf %61 : vector<1x8x8xf32> to vector<1x8x8xbf16>
    "tpu.trace_start"() <{level = 10 : i32, message = "bqk,bkd->bqd"}> : () -> ()
    %cst_34 = arith.constant dense<0.000000e+00> : vector<1x8x32xf32>
    %63 = tpu.matmul %62, %49, %cst_34 {dimension_numbers = #tpu.dot_dimension_numbers<[2], [1], [1], [2], [0, 0, 0, 1, 1, 2], [0], [0]>} : vector<1x8x8xbf16>, vector<1x8x32xbf16>, vector<1x8x32xf32> -> vector<1x8x32xf32>
    "tpu.trace_stop"() : () -> ()
    %64 = vector.shape_cast %63 : vector<1x8x32xf32> to vector<8x32xf32>
    %65 = arith.truncf %64 : vector<8x32xf32> to vector<8x32xbf16>
    %66 = vector.extract_strided_slice %39 {offsets = [0, 0], sizes = [32, 128], strides = [1, 1]} : vector<128x128xbf16> to vector<32x128xbf16>
    %cst_35 = arith.constant dense<0.000000e+00> : vector<8x128xf32>
    %67 = tpu.matmul %65, %66, %cst_35 {dimension_numbers = #tpu.dot_dimension_numbers<[1], [0], [0], [1], [0, 0, 1, 1], [], []>} : vector<8x32xbf16>, vector<32x128xbf16>, vector<8x128xf32> -> vector<8x128xf32>
    %68 = vector.broadcast %40 : vector<1x128xf32> to vector<8x128xf32>
    %69 = arith.addf %68, %67 : vector<8x128xf32>
    %70 = vector.extract_strided_slice %18 {offsets = [0, 32], sizes = [8, 32], strides = [1, 1]} : vector<8x128xf32> to vector<8x32xf32>
    %71 = arith.truncf %70 : vector<8x32xf32> to vector<8x32xbf16>
    %72 = vector.shape_cast %71 : vector<8x32xbf16> to vector<1x8x32xbf16>
    %73 = vector.extract_strided_slice %24 {offsets = [0, 32], sizes = [8, 32], strides = [1, 1]} : vector<8x128xf32> to vector<8x32xf32>
    %74 = arith.truncf %73 : vector<8x32xf32> to vector<8x32xbf16>
    %75 = vector.shape_cast %74 : vector<8x32xbf16> to vector<1x8x32xbf16>
    %76 = vector.extract_strided_slice %30 {offsets = [0, 32], sizes = [8, 32], strides = [1, 1]} : vector<8x128xf32> to vector<8x32xf32>
    %77 = arith.truncf %76 : vector<8x32xf32> to vector<8x32xbf16>
    %78 = vector.shape_cast %77 : vector<8x32xbf16> to vector<1x8x32xbf16>
    "tpu.trace_start"() <{level = 10 : i32, message = "bqd,bkd->bqk"}> : () -> ()
    %cst_36 = arith.constant dense<0.000000e+00> : vector<1x8x8xf32>
    %79 = tpu.matmul %72, %75, %cst_36 {dimension_numbers = #tpu.dot_dimension_numbers<[2], [2], [1], [1], [0, 0, 0, 1, 1, 1], [0], [0]>} : vector<1x8x32xbf16>, vector<1x8x32xbf16>, vector<1x8x8xf32> -> vector<1x8x8xf32>
    "tpu.trace_stop"() : () -> ()
    %80 = arith.addf %79, %37 : vector<1x8x8xf32>
    %cst_37 = arith.constant dense<0xFF800000> : vector<1x8xf32>
    %81 = vector.multi_reduction <maximumf>, %80, %cst_37 [2] : vector<1x8x8xf32> to vector<1x8xf32>
    %82 = vector.shape_cast %81 : vector<1x8xf32> to vector<1x8x1xf32>
    %83 = vector.broadcast %82 : vector<1x8x1xf32> to vector<1x8x8xf32>
    %84 = arith.subf %80, %83 : vector<1x8x8xf32>
    %85 = math.exp %84 : vector<1x8x8xf32>
    %cst_38 = arith.constant dense<0.000000e+00> : vector<1x8xf32>
    %86 = vector.multi_reduction <add>, %85, %cst_38 [2] : vector<1x8x8xf32> to vector<1x8xf32>
    %87 = vector.shape_cast %86 : vector<1x8xf32> to vector<1x8x1xf32>
    %88 = tpu.reciprocal %87 {approx = true} : vector<1x8x1xf32> -> vector<1x8x1xf32>
    %89 = vector.broadcast %88 : vector<1x8x1xf32> to vector<1x8x8xf32>
    %90 = arith.mulf %85, %89 : vector<1x8x8xf32>
    %91 = arith.truncf %90 : vector<1x8x8xf32> to vector<1x8x8xbf16>
    "tpu.trace_start"() <{level = 10 : i32, message = "bqk,bkd->bqd"}> : () -> ()
    %cst_39 = arith.constant dense<0.000000e+00> : vector<1x8x32xf32>
    %92 = tpu.matmul %91, %78, %cst_39 {dimension_numbers = #tpu.dot_dimension_numbers<[2], [1], [1], [2], [0, 0, 0, 1, 1, 2], [0], [0]>} : vector<1x8x8xbf16>, vector<1x8x32xbf16>, vector<1x8x32xf32> -> vector<1x8x32xf32>
    "tpu.trace_stop"() : () -> ()
    %93 = vector.shape_cast %92 : vector<1x8x32xf32> to vector<8x32xf32>
    %94 = arith.truncf %93 : vector<8x32xf32> to vector<8x32xbf16>
    %95 = vector.extract_strided_slice %39 {offsets = [32, 0], sizes = [32, 128], strides = [1, 1]} : vector<128x128xbf16> to vector<32x128xbf16>
    %cst_40 = arith.constant dense<0.000000e+00> : vector<8x128xf32>
    %96 = tpu.matmul %94, %95, %cst_40 {dimension_numbers = #tpu.dot_dimension_numbers<[1], [0], [0], [1], [0, 0, 1, 1], [], []>} : vector<8x32xbf16>, vector<32x128xbf16>, vector<8x128xf32> -> vector<8x128xf32>
    %97 = arith.addf %69, %96 : vector<8x128xf32>
    %98 = vector.extract_strided_slice %18 {offsets = [0, 64], sizes = [8, 32], strides = [1, 1]} : vector<8x128xf32> to vector<8x32xf32>
    %99 = arith.truncf %98 : vector<8x32xf32> to vector<8x32xbf16>
    %100 = vector.shape_cast %99 : vector<8x32xbf16> to vector<1x8x32xbf16>
    %101 = vector.extract_strided_slice %24 {offsets = [0, 64], sizes = [8, 32], strides = [1, 1]} : vector<8x128xf32> to vector<8x32xf32>
    %102 = arith.truncf %101 : vector<8x32xf32> to vector<8x32xbf16>
    %103 = vector.shape_cast %102 : vector<8x32xbf16> to vector<1x8x32xbf16>
    %104 = vector.extract_strided_slice %30 {offsets = [0, 64], sizes = [8, 32], strides = [1, 1]} : vector<8x128xf32> to vector<8x32xf32>
    %105 = arith.truncf %104 : vector<8x32xf32> to vector<8x32xbf16>
    %106 = vector.shape_cast %105 : vector<8x32xbf16> to vector<1x8x32xbf16>
    "tpu.trace_start"() <{level = 10 : i32, message = "bqd,bkd->bqk"}> : () -> ()
    %cst_41 = arith.constant dense<0.000000e+00> : vector<1x8x8xf32>
    %107 = tpu.matmul %100, %103, %cst_41 {dimension_numbers = #tpu.dot_dimension_numbers<[2], [2], [1], [1], [0, 0, 0, 1, 1, 1], [0], [0]>} : vector<1x8x32xbf16>, vector<1x8x32xbf16>, vector<1x8x8xf32> -> vector<1x8x8xf32>
    "tpu.trace_stop"() : () -> ()
    %108 = arith.addf %107, %37 : vector<1x8x8xf32>
    %cst_42 = arith.constant dense<0xFF800000> : vector<1x8xf32>
    %109 = vector.multi_reduction <maximumf>, %108, %cst_42 [2] : vector<1x8x8xf32> to vector<1x8xf32>
    %110 = vector.shape_cast %109 : vector<1x8xf32> to vector<1x8x1xf32>
    %111 = vector.broadcast %110 : vector<1x8x1xf32> to vector<1x8x8xf32>
    %112 = arith.subf %108, %111 : vector<1x8x8xf32>
    %113 = math.exp %112 : vector<1x8x8xf32>
    %cst_43 = arith.constant dense<0.000000e+00> : vector<1x8xf32>
    %114 = vector.multi_reduction <add>, %113, %cst_43 [2] : vector<1x8x8xf32> to vector<1x8xf32>
    %115 = vector.shape_cast %114 : vector<1x8xf32> to vector<1x8x1xf32>
    %116 = tpu.reciprocal %115 {approx = true} : vector<1x8x1xf32> -> vector<1x8x1xf32>
    %117 = vector.broadcast %116 : vector<1x8x1xf32> to vector<1x8x8xf32>
    %118 = arith.mulf %113, %117 : vector<1x8x8xf32>
    %119 = arith.truncf %118 : vector<1x8x8xf32> to vector<1x8x8xbf16>
    "tpu.trace_start"() <{level = 10 : i32, message = "bqk,bkd->bqd"}> : () -> ()
    %cst_44 = arith.constant dense<0.000000e+00> : vector<1x8x32xf32>
    %120 = tpu.matmul %119, %106, %cst_44 {dimension_numbers = #tpu.dot_dimension_numbers<[2], [1], [1], [2], [0, 0, 0, 1, 1, 2], [0], [0]>} : vector<1x8x8xbf16>, vector<1x8x32xbf16>, vector<1x8x32xf32> -> vector<1x8x32xf32>
    "tpu.trace_stop"() : () -> ()
    %121 = vector.shape_cast %120 : vector<1x8x32xf32> to vector<8x32xf32>
    %122 = arith.truncf %121 : vector<8x32xf32> to vector<8x32xbf16>
    %123 = vector.extract_strided_slice %39 {offsets = [64, 0], sizes = [32, 128], strides = [1, 1]} : vector<128x128xbf16> to vector<32x128xbf16>
    %cst_45 = arith.constant dense<0.000000e+00> : vector<8x128xf32>
    %124 = tpu.matmul %122, %123, %cst_45 {dimension_numbers = #tpu.dot_dimension_numbers<[1], [0], [0], [1], [0, 0, 1, 1], [], []>} : vector<8x32xbf16>, vector<32x128xbf16>, vector<8x128xf32> -> vector<8x128xf32>
    %125 = arith.addf %97, %124 : vector<8x128xf32>
    %126 = vector.extract_strided_slice %18 {offsets = [0, 96], sizes = [8, 32], strides = [1, 1]} : vector<8x128xf32> to vector<8x32xf32>
    %127 = arith.truncf %126 : vector<8x32xf32> to vector<8x32xbf16>
    %128 = vector.shape_cast %127 : vector<8x32xbf16> to vector<1x8x32xbf16>
    %129 = vector.extract_strided_slice %24 {offsets = [0, 96], sizes = [8, 32], strides = [1, 1]} : vector<8x128xf32> to vector<8x32xf32>
    %130 = arith.truncf %129 : vector<8x32xf32> to vector<8x32xbf16>
    %131 = vector.shape_cast %130 : vector<8x32xbf16> to vector<1x8x32xbf16>
    %132 = vector.extract_strided_slice %30 {offsets = [0, 96], sizes = [8, 32], strides = [1, 1]} : vector<8x128xf32> to vector<8x32xf32>
    %133 = arith.truncf %132 : vector<8x32xf32> to vector<8x32xbf16>
    %134 = vector.shape_cast %133 : vector<8x32xbf16> to vector<1x8x32xbf16>
    "tpu.trace_start"() <{level = 10 : i32, message = "bqd,bkd->bqk"}> : () -> ()
    %cst_46 = arith.constant dense<0.000000e+00> : vector<1x8x8xf32>
    %135 = tpu.matmul %128, %131, %cst_46 {dimension_numbers = #tpu.dot_dimension_numbers<[2], [2], [1], [1], [0, 0, 0, 1, 1, 1], [0], [0]>} : vector<1x8x32xbf16>, vector<1x8x32xbf16>, vector<1x8x8xf32> -> vector<1x8x8xf32>
    "tpu.trace_stop"() : () -> ()
    %136 = arith.addf %135, %37 : vector<1x8x8xf32>
    %cst_47 = arith.constant dense<0xFF800000> : vector<1x8xf32>
    %137 = vector.multi_reduction <maximumf>, %136, %cst_47 [2] : vector<1x8x8xf32> to vector<1x8xf32>
    %138 = vector.shape_cast %137 : vector<1x8xf32> to vector<1x8x1xf32>
    %139 = vector.broadcast %138 : vector<1x8x1xf32> to vector<1x8x8xf32>
    %140 = arith.subf %136, %139 : vector<1x8x8xf32>
    %141 = math.exp %140 : vector<1x8x8xf32>
    %cst_48 = arith.constant dense<0.000000e+00> : vector<1x8xf32>
    %142 = vector.multi_reduction <add>, %141, %cst_48 [2] : vector<1x8x8xf32> to vector<1x8xf32>
    %143 = vector.shape_cast %142 : vector<1x8xf32> to vector<1x8x1xf32>
    %144 = tpu.reciprocal %143 {approx = true} : vector<1x8x1xf32> -> vector<1x8x1xf32>
    %145 = vector.broadcast %144 : vector<1x8x1xf32> to vector<1x8x8xf32>
    %146 = arith.mulf %141, %145 : vector<1x8x8xf32>
    %147 = arith.truncf %146 : vector<1x8x8xf32> to vector<1x8x8xbf16>
    "tpu.trace_start"() <{level = 10 : i32, message = "bqk,bkd->bqd"}> : () -> ()
    %cst_49 = arith.constant dense<0.000000e+00> : vector<1x8x32xf32>
    %148 = tpu.matmul %147, %134, %cst_49 {dimension_numbers = #tpu.dot_dimension_numbers<[2], [1], [1], [2], [0, 0, 0, 1, 1, 2], [0], [0]>} : vector<1x8x8xbf16>, vector<1x8x32xbf16>, vector<1x8x32xf32> -> vector<1x8x32xf32>
    "tpu.trace_stop"() : () -> ()
    %149 = vector.shape_cast %148 : vector<1x8x32xf32> to vector<8x32xf32>
    %150 = arith.truncf %149 : vector<8x32xf32> to vector<8x32xbf16>
    %151 = vector.extract_strided_slice %39 {offsets = [96, 0], sizes = [32, 128], strides = [1, 1]} : vector<128x128xbf16> to vector<32x128xbf16>
    %cst_50 = arith.constant dense<0.000000e+00> : vector<8x128xf32>
    %152 = tpu.matmul %150, %151, %cst_50 {dimension_numbers = #tpu.dot_dimension_numbers<[1], [0], [0], [1], [0, 0, 1, 1], [], []>} : vector<8x32xbf16>, vector<32x128xbf16>, vector<8x128xf32> -> vector<8x128xf32>
    %153 = arith.addf %125, %152 : vector<8x128xf32>
    %154 = arith.addf %11, %153 : vector<8x128xf32>
    %c5 = arith.constant 5 : index
    %c0_51 = arith.constant 0 : index
    %155 = vector.load %arg4[%c5, %c0_51] : memref<12x128xf32, #tpu.memory_space<vmem>>, vector<1x128xf32>
    %c6 = arith.constant 6 : index
    %c0_52 = arith.constant 0 : index
    %156 = vector.load %arg4[%c6, %c0_52] : memref<12x128xf32, #tpu.memory_space<vmem>>, vector<1x128xf32>
    %cst_53 = arith.constant dense<0.000000e+00> : vector<8xf32>
    %157 = vector.multi_reduction <add>, %154, %cst_53 [1] : vector<8x128xf32> to vector<8xf32>
    %158 = vector.shape_cast %157 : vector<8xf32> to vector<8x1xf32>
    %cst_54 = arith.constant 1.280000e+02 : f32
    %159 = vector.broadcast %cst_54 : f32 to vector<8x1xf32>
    %160 = arith.divf %158, %159 : vector<8x1xf32>
    %161 = vector.broadcast %160 : vector<8x1xf32> to vector<8x128xf32>
    %162 = arith.subf %154, %161 : vector<8x128xf32>
    %163 = arith.mulf %162, %162 : vector<8x128xf32>
    %cst_55 = arith.constant dense<0.000000e+00> : vector<8xf32>
    %164 = vector.multi_reduction <add>, %163, %cst_55 [1] : vector<8x128xf32> to vector<8xf32>
    %165 = vector.shape_cast %164 : vector<8xf32> to vector<8x1xf32>
    %cst_56 = arith.constant 1.280000e+02 : f32
    %166 = vector.broadcast %cst_56 : f32 to vector<8x1xf32>
    %167 = arith.divf %165, %166 : vector<8x1xf32>
    %168 = vector.broadcast %160 : vector<8x1xf32> to vector<8x128xf32>
    %169 = arith.subf %154, %168 : vector<8x128xf32>
    %cst_57 = arith.constant 9.99999974E-6 : f32
    %170 = vector.broadcast %cst_57 : f32 to vector<8x1xf32>
    %171 = arith.addf %167, %170 : vector<8x1xf32>
    %172 = math.rsqrt %171 : vector<8x1xf32>
    %173 = vector.broadcast %172 : vector<8x1xf32> to vector<8x128xf32>
    %174 = arith.mulf %169, %173 : vector<8x128xf32>
    %175 = vector.broadcast %155 : vector<1x128xf32> to vector<8x128xf32>
    %176 = arith.mulf %174, %175 : vector<8x128xf32>
    %177 = vector.broadcast %156 : vector<1x128xf32> to vector<8x128xf32>
    %178 = arith.addf %176, %177 : vector<8x128xf32>
    %179 = arith.truncf %178 : vector<8x128xf32> to vector<8x128xbf16>
    %c5_58 = arith.constant 5 : index
    %c0_59 = arith.constant 0 : index
    %c0_60 = arith.constant 0 : index
    %180 = vector.load %arg3[%c5_58, %c0_59, %c0_60] : memref<7x128x128xbf16, #tpu.memory_space<vmem>>, vector<1x128x128xbf16>
    %181 = vector.shape_cast %180 : vector<1x128x128xbf16> to vector<128x128xbf16>
    %cst_61 = arith.constant dense<0.000000e+00> : vector<8x128xf32>
    %182 = tpu.matmul %179, %181, %cst_61 {dimension_numbers = #tpu.dot_dimension_numbers<[1], [0], [0], [1], [0, 0, 1, 1], [], []>} : vector<8x128xbf16>, vector<128x128xbf16>, vector<8x128xf32> -> vector<8x128xf32>
    %c7 = arith.constant 7 : index
    %c0_62 = arith.constant 0 : index
    %183 = vector.load %arg4[%c7, %c0_62] : memref<12x128xf32, #tpu.memory_space<vmem>>, vector<1x128xf32>
    %184 = vector.broadcast %183 : vector<1x128xf32> to vector<8x128xf32>
    %185 = arith.addf %182, %184 : vector<8x128xf32>
    %cst_63 = arith.constant 0.000000e+00 : f32
    %186 = vector.broadcast %cst_63 : f32 to vector<8x128xf32>
    %187 = arith.maximumf %185, %186 : vector<8x128xf32>
    %188 = arith.truncf %187 : vector<8x128xf32> to vector<8x128xbf16>
    %c6_64 = arith.constant 6 : index
    %c0_65 = arith.constant 0 : index
    %c0_66 = arith.constant 0 : index
    %189 = vector.load %arg3[%c6_64, %c0_65, %c0_66] : memref<7x128x128xbf16, #tpu.memory_space<vmem>>, vector<1x128x128xbf16>
    %190 = vector.shape_cast %189 : vector<1x128x128xbf16> to vector<128x128xbf16>
    %cst_67 = arith.constant dense<0.000000e+00> : vector<8x128xf32>
    %191 = tpu.matmul %188, %190, %cst_67 {dimension_numbers = #tpu.dot_dimension_numbers<[1], [0], [0], [1], [0, 0, 1, 1], [], []>} : vector<8x128xbf16>, vector<128x128xbf16>, vector<8x128xf32> -> vector<8x128xf32>
    %c8 = arith.constant 8 : index
    %c0_68 = arith.constant 0 : index
    %192 = vector.load %arg4[%c8, %c0_68] : memref<12x128xf32, #tpu.memory_space<vmem>>, vector<1x128xf32>
    %193 = vector.broadcast %192 : vector<1x128xf32> to vector<8x128xf32>
    %194 = arith.addf %191, %193 : vector<8x128xf32>
    %195 = arith.addf %194, %178 : vector<8x128xf32>
    %c9 = arith.constant 9 : index
    %c0_69 = arith.constant 0 : index
    %196 = vector.load %arg4[%c9, %c0_69] : memref<12x128xf32, #tpu.memory_space<vmem>>, vector<1x128xf32>
    %c10 = arith.constant 10 : index
    %c0_70 = arith.constant 0 : index
    %197 = vector.load %arg4[%c10, %c0_70] : memref<12x128xf32, #tpu.memory_space<vmem>>, vector<1x128xf32>
    %cst_71 = arith.constant dense<0.000000e+00> : vector<8xf32>
    %198 = vector.multi_reduction <add>, %195, %cst_71 [1] : vector<8x128xf32> to vector<8xf32>
    %199 = vector.shape_cast %198 : vector<8xf32> to vector<8x1xf32>
    %cst_72 = arith.constant 1.280000e+02 : f32
    %200 = vector.broadcast %cst_72 : f32 to vector<8x1xf32>
    %201 = arith.divf %199, %200 : vector<8x1xf32>
    %202 = vector.broadcast %201 : vector<8x1xf32> to vector<8x128xf32>
    %203 = arith.subf %195, %202 : vector<8x128xf32>
    %204 = arith.mulf %203, %203 : vector<8x128xf32>
    %cst_73 = arith.constant dense<0.000000e+00> : vector<8xf32>
    %205 = vector.multi_reduction <add>, %204, %cst_73 [1] : vector<8x128xf32> to vector<8xf32>
    %206 = vector.shape_cast %205 : vector<8xf32> to vector<8x1xf32>
    %cst_74 = arith.constant 1.280000e+02 : f32
    %207 = vector.broadcast %cst_74 : f32 to vector<8x1xf32>
    %208 = arith.divf %206, %207 : vector<8x1xf32>
    %209 = vector.broadcast %201 : vector<8x1xf32> to vector<8x128xf32>
    %210 = arith.subf %195, %209 : vector<8x128xf32>
    %cst_75 = arith.constant 9.99999974E-6 : f32
    %211 = vector.broadcast %cst_75 : f32 to vector<8x1xf32>
    %212 = arith.addf %208, %211 : vector<8x1xf32>
    %213 = math.rsqrt %212 : vector<8x1xf32>
    %214 = vector.broadcast %213 : vector<8x1xf32> to vector<8x128xf32>
    %215 = arith.mulf %210, %214 : vector<8x128xf32>
    %216 = vector.broadcast %196 : vector<1x128xf32> to vector<8x128xf32>
    %217 = arith.mulf %215, %216 : vector<8x128xf32>
    %218 = vector.broadcast %197 : vector<1x128xf32> to vector<8x128xf32>
    %219 = arith.addf %217, %218 : vector<8x128xf32>
    %c11 = arith.constant 11 : index
    %c0_76 = arith.constant 0 : index
    %220 = vector.load %arg4[%c11, %c0_76] : memref<12x128xf32, #tpu.memory_space<vmem>>, vector<1x128xf32>
    %cst_77 = arith.constant dense<0.000000e+00> : vector<1x8xf32>
    %221 = tpu.matmul %220, %219, %cst_77 {dimension_numbers = #tpu.dot_dimension_numbers<[1], [1], [0], [0], [0, 0, 1, 0], [], []>} : vector<1x128xf32>, vector<8x128xf32>, vector<1x8xf32> -> vector<1x8xf32>
    %c0_78 = arith.constant 0 : index
    %c0_79 = arith.constant 0 : index
    %222 = vector.load %arg5[%c0_78, %c0_79] : memref<1x1xf32, #tpu.memory_space<vmem>>, vector<1x1xf32>
    %223 = vector.broadcast %222 : vector<1x1xf32> to vector<1x8xf32>
    %224 = arith.addf %221, %223 : vector<1x8xf32>
    %225 = arith.negf %224 : vector<1x8xf32>
    %226 = math.exp %225 : vector<1x8xf32>
    %cst_80 = arith.constant 1.000000e+00 : f32
    %227 = vector.broadcast %cst_80 : f32 to vector<1x8xf32>
    %228 = arith.addf %227, %226 : vector<1x8xf32>
    %229 = arith.divf %227, %228 : vector<1x8xf32>
    %c0_81 = arith.constant 0 : index
    %c0_82 = arith.constant 0 : index
    %c0_83 = arith.constant 0 : index
    %230 = vector.load %arg6[%c0_81, %c0_82, %c0_83] : memref<1x1x8xf32, #tpu.memory_space<vmem>>, vector<1x1x8xf32>
    %231 = vector.shape_cast %230 : vector<1x1x8xf32> to vector<1x8xf32>
    %232 = vector.shape_cast %229 : vector<1x8xf32> to vector<1x1x8xf32>
    tpu.vector_store %arg6[%c0_81, %c0_82, %c0_83], %232 {strides = array<i32>} : memref<1x1x8xf32, #tpu.memory_space<vmem>>, vector<1x1x8xf32>,
    return
  }
  func.func @transform_0(%arg0: i32) -> (i32, i32, i32) {
    %c0_i32 = arith.constant 0 : i32
    %c0_i32_0 = arith.constant 0 : i32
    %c0_i32_1 = arith.constant 0 : i32
    return %arg0, %c0_i32, %c0_i32_0 : i32, i32, i32
  }
  func.func @transform_1(%arg0: i32) -> (i32, i32, i32) {
    %c0_i32 = arith.constant 0 : i32
    %c0_i32_0 = arith.constant 0 : i32
    %c0_i32_1 = arith.constant 0 : i32
    return %arg0, %c0_i32, %c0_i32_0 : i32, i32, i32
  }
  func.func @transform_2(%arg0: i32) -> (i32, i32, i32) {
    %c0_i32 = arith.constant 0 : i32
    %c0_i32_0 = arith.constant 0 : i32
    %c0_i32_1 = arith.constant 0 : i32
    %c0_i32_2 = arith.constant 0 : i32
    return %c0_i32, %c0_i32_0, %c0_i32_1 : i32, i32, i32
  }
  func.func @transform_3(%arg0: i32) -> (i32, i32) {
    %c0_i32 = arith.constant 0 : i32
    %c0_i32_0 = arith.constant 0 : i32
    %c0_i32_1 = arith.constant 0 : i32
    return %c0_i32, %c0_i32_0 : i32, i32
  }
  func.func @transform_4(%arg0: i32) -> (i32, i32) {
    %c0_i32 = arith.constant 0 : i32
    %c0_i32_0 = arith.constant 0 : i32
    %c0_i32_1 = arith.constant 0 : i32
    return %c0_i32, %c0_i32_0 : i32, i32
  }
  func.func @transform_5(%arg0: i32) -> (i32, i32, i32) {
    %c0_i32 = arith.constant 0 : i32
    %c0_i32_0 = arith.constant 0 : i32
    %c0_i32_1 = arith.constant 0 : i32
    return %arg0, %c0_i32, %c0_i32_0 : i32, i32, i32
  }
}

</mosaic_0001>

<llo_original>
// kernel: tpu_custom_call.1
$region0: #{tpu_custom_call.1}
  #allocation0 [shape = 'u32[]', space=smem, size = 0x4, offset = 0x4, fixed_abs, tag = 'smem constant byte address 0x4 - core index']
  #allocation1 [shape = 'u32[72,128]{1,0:T(1,128)}', space=vmem, size = 0x9000, scoped, tag = 'internal scratch']
  #allocation2 [shape = 'f32[1,1]{1,0:T(1,128)S(1)}', space=vmem, size = 0x200, scoped, tag = 'scoped memory for tpu_custom_call.1']
  %s0 = inlined_call_operand.hbm [shape: f32[2,8,128], index: 0, kind: input, shape index: {}]
  %s1 = inlined_call_operand.hbm [shape: f32[2,8,128], index: 1, kind: input, shape index: {}]
  %s2 = inlined_call_operand.hbm [shape: bf16[7,128,128], index: 2, kind: input, shape index: {}]
  %s3 = inlined_call_operand.hbm [shape: f32[12,128], index: 3, kind: input, shape index: {}]
  %s4 = inlined_call_operand.<no memory space> [shape: f32[1,1], index: 4, kind: input, shape index: {}]
  %s5 = inlined_call_operand.hbm [shape: f32[2,1,8], index: 5, kind: output, shape index: {}]
  %s6 = sld [smem:[#allocation0]]
  $region69: #{tpu_custom_call.1} parent=0
    _
  %s8 = ssub.s32 1, %s6
  %s9 = scalar_select 0, %s8, %s6
  %v10 = vstv %s4
  %11 = vst [vmem:[#allocation2] sm:$0x1] %v10
  $region1: #{tpu_custom_call.1} parent=0
    #allocation3 [shape = 'u8[8192]{0}', space=vmem, size = 0x2000, scoped, tag = 'input window, operand 0']
    #allocation4 [shape = 's32[2]{0}', space=sflag, size = 0x8, scoped, tag = 'scoped memory for tpu_custom_call.1']
    #allocation5 [shape = 's32[2]{0}', space=sflag, size = 0x8, scoped, tag = 'scoped memory for tpu_custom_call.1']
    #allocation6 [shape = 'u8[8192]{0}', space=vmem, size = 0x2000, scoped, tag = 'input window, operand 1']
    #allocation7 [shape = 's32[2]{0}', space=sflag, size = 0x8, scoped, tag = 'scoped memory for tpu_custom_call.1']
    #allocation8 [shape = 'u8[229376]{0}', space=vmem, size = 0x38000, scoped, tag = 'input window, operand 2, single buffered']
    #allocation9 [shape = 'u8[8192]{0}', space=vmem, size = 0x2000, scoped, tag = 'input window, operand 3, single buffered']
    #allocation10 [shape = 's32[1]{0}', space=sflag, size = 0x4, scoped, tag = 'scoped memory for tpu_custom_call.1']
    #allocation11 [shape = 'u8[1024]{0}', space=vmem, size = 0x400, scoped, tag = 'output window, operand 0']
    %12 = vsyncpa [#allocation4], 0
    %s13 = scalar_lea.sflag [#allocation4], 1
    %14 = vsyncpa %s13, 0
    %15 = vsyncpa [#allocation7], 0
    %s16 = scalar_lea.sflag [#allocation7], 1
    %17 = vsyncpa %s16, 0
    %18 = vsyncpa [#allocation10], 0
    %19 = vsyncpa [#allocation5], 0
    %s20 = scalar_lea.sflag [#allocation5], 1
    %21 = vsyncpa %s20, 0
    loop: start=0, step=1, limit=4
    $region2: #{tpu_custom_call.1} parent=1 // loop_pre_header
      _
    $region3: #{tpu_custom_call.1} parent=1 // loop_header
      %s23 = sphi 0, %s27
      %p24 = scmp.ge.s32.totalorder %s23, 4
      %s33 = sphi 0, %s35
      %s36 = sphi 0, %s33
      %s37 = sphi 0, %s36
      %s53 = sphi 0, %s37
      %s59 = sphi 0, %s61
      %s62 = sphi 0, %s59
      %s63 = sphi 0, %s62
      %s79 = sphi 0, %s63
      %s83 = sphi 0, %s83
      %s85 = sphi 0, %s83
      %s86 = sphi 0, %s85
      %s100 = sphi 0, %s86
      %s104 = sphi 0, %s104
      %s106 = sphi 0, %s104
      %s107 = sphi 0, %s106
      %s121 = sphi 0, %s107
      %s125 = sphi 0, %s125
      %s127 = sphi 0, %s125
      %s128 = sphi 0, %s127
      %s142 = sphi 0, %s128
      %s148 = sphi 0, %s150
      %s151 = sphi 0, %s148
      %s152 = sphi 0, %s151
      %s168 = sphi 0, %s152
    $region4: #{tpu_custom_call.1} parent=1 // loop_header_branch
      %26 = sbr.rel (%p24) target = $region8
    $region5: #{tpu_custom_call.1} parent=1 // loop_body
      %s28 = ssub.s32 %s23, 1
      %s29 = ssub.s32 %s23, 2
      %s30 = sadd.s32 %s23, 1
      %s31 = ssub.s32 %s23, %s30
      %p32 = scmp.eq.s32.totalorder %s31, 0
      %s34 = sadd.s32 %s33, 1
      %s35 = scalar_select %p32, %s33, %s34
      %p38 = pneg %p32
      %p39 = scmp.eq.s32.totalorder %s23, 1
      %p40 = por %p38, %p39
      %p41 = scmp.ne.s32.totalorder %s33, %s36
      %p42 = scmp.eq.s32.totalorder %s23, 0
      %p43 = por %p41, %p42
      %p44 = scmp.ne.s32.totalorder %s33, %s36
      %p45 = scmp.eq.s32.totalorder %s28, 1
      %p46 = por %p44, %p45
      %p47 = scmp.ne.s32.totalorder %s36, %s37
      %p48 = scmp.eq.s32.totalorder %s28, 0
      %p49 = por %p47, %p48
      %p50 = scmp.ne.s32.totalorder %s36, %s37
      %p51 = scmp.eq.s32.totalorder %s29, 1
      %p52 = por %p50, %p51
      %p54 = scmp.ne.s32.totalorder %s37, %s53
      %p55 = scmp.eq.s32.totalorder %s29, 0
      %p56 = por %p54, %p55
      %s57 = ssub.s32 %s23, %s30
      %p58 = scmp.eq.s32.totalorder %s57, 0
      %s60 = sadd.s32 %s59, 1
      %s61 = scalar_select %p58, %s59, %s60
      %p64 = pneg %p58
      %p65 = scmp.eq.s32.totalorder %s23, 1
      %p66 = por %p64, %p65
      %p67 = scmp.ne.s32.totalorder %s59, %s62
      %p68 = scmp.eq.s32.totalorder %s23, 0
      %p69 = por %p67, %p68
      %p70 = scmp.ne.s32.totalorder %s59, %s62
      %p71 = scmp.eq.s32.totalorder %s28, 1
      %p72 = por %p70, %p71
      %p73 = scmp.ne.s32.totalorder %s62, %s63
      %p74 = scmp.eq.s32.totalorder %s28, 0
      %p75 = por %p73, %p74
      %p76 = scmp.ne.s32.totalorder %s62, %s63
      %p77 = scmp.eq.s32.totalorder %s29, 1
      %p78 = por %p76, %p77
      %p80 = scmp.ne.s32.totalorder %s63, %s79
      %p81 = scmp.eq.s32.totalorder %s29, 0
      %p82 = por %p80, %p81
      %s84 = sadd.s32 %s83, 1
      %p87 = scmp.eq.s32.totalorder %s23, 1
      %p88 = scmp.ne.s32.totalorder %s83, %s85
      %p89 = scmp.eq.s32.totalorder %s23, 0
      %p90 = por %p88, %p89
      %p91 = scmp.ne.s32.totalorder %s83, %s85
      %p92 = scmp.eq.s32.totalorder %s28, 1
      %p93 = por %p91, %p92
      %p94 = scmp.ne.s32.totalorder %s85, %s86
      %p95 = scmp.eq.s32.totalorder %s28, 0
      %p96 = por %p94, %p95
      %p97 = scmp.ne.s32.totalorder %s85, %s86
      %p98 = scmp.eq.s32.totalorder %s29, 1
      %p99 = por %p97, %p98
      %p101 = scmp.ne.s32.totalorder %s86, %s100
      %p102 = scmp.eq.s32.totalorder %s29, 0
      %p103 = por %p101, %p102
      %s105 = sadd.s32 %s104, 1
      %p108 = scmp.eq.s32.totalorder %s23, 1
      %p109 = scmp.ne.s32.totalorder %s104, %s106
      %p110 = scmp.eq.s32.totalorder %s23, 0
      %p111 = por %p109, %p110
      %p112 = scmp.ne.s32.totalorder %s104, %s106
      %p113 = scmp.eq.s32.totalorder %s28, 1
      %p114 = por %p112, %p113
      %p115 = scmp.ne.s32.totalorder %s106, %s107
      %p116 = scmp.eq.s32.totalorder %s28, 0
      %p117 = por %p115, %p116
      %p118 = scmp.ne.s32.totalorder %s106, %s107
      %p119 = scmp.eq.s32.totalorder %s29, 1
      %p120 = por %p118, %p119
      %p122 = scmp.ne.s32.totalorder %s107, %s121
      %p123 = scmp.eq.s32.totalorder %s29, 0
      %p124 = por %p122, %p123
      %s126 = sadd.s32 %s125, 1
      %p129 = scmp.eq.s32.totalorder %s23, 1
      %p130 = scmp.ne.s32.totalorder %s125, %s127
      %p131 = scmp.eq.s32.totalorder %s23, 0
      %p132 = por %p130, %p131
      %p133 = scmp.ne.s32.totalorder %s125, %s127
      %p134 = scmp.eq.s32.totalorder %s28, 1
      %p135 = por %p133, %p134
      %p136 = scmp.ne.s32.totalorder %s127, %s128
      %p137 = scmp.eq.s32.totalorder %s28, 0
      %p138 = por %p136, %p137
      %p139 = scmp.ne.s32.totalorder %s127, %s128
      %p140 = scmp.eq.s32.totalorder %s29, 1
      %p141 = por %p139, %p140
      %p143 = scmp.ne.s32.totalorder %s128, %s142
      %p144 = scmp.eq.s32.totalorder %s29, 0
      %p145 = por %p143, %p144
      %s146 = ssub.s32 %s23, %s30
      %p147 = scmp.eq.s32.totalorder %s146, 0
      %s149 = sadd.s32 %s148, 1
      %s150 = scalar_select %p147, %s148, %s149
      %p153 = pneg %p147
      %p154 = scmp.eq.s32.totalorder %s23, 1
      %p155 = por %p153, %p154
      %p156 = scmp.ne.s32.totalorder %s148, %s151
      %p157 = scmp.eq.s32.totalorder %s23, 0
      %p158 = por %p156, %p157
      %p159 = scmp.ne.s32.totalorder %s148, %s151
      %p160 = scmp.eq.s32.totalorder %s28, 1
      %p161 = por %p159, %p160
      %p162 = scmp.ne.s32.totalorder %s151, %s152
      %p163 = scmp.eq.s32.totalorder %s28, 0
      %p164 = por %p162, %p163
      %p165 = scmp.ne.s32.totalorder %s151, %s152
      %p166 = scmp.eq.s32.totalorder %s29, 1
      %p167 = por %p165, %p166
      %p169 = scmp.ne.s32.totalorder %s152, %s168
      %p170 = scmp.eq.s32.totalorder %s29, 0
      %p171 = por %p169, %p170
      %p172 = scmp.le.s32.totalorder 1, %s23
      %p173 = scmp.lt.s32.totalorder %s23, 3
      %p174 = pnand %p172, %p173
      %p175 = pneg %p174
      // Predicated region
      $region9: #{tpu_custom_call.1} parent=5 // pred_check
        _
      $region10: #{tpu_custom_call.1} parent=5 // pred_check_branch
        %177 = sbr.rel (%p174) target = $region12
      $region11: #{tpu_custom_call.1} parent=5 // pred_region
        %s178 = ssub.s32 %s23, 1
        // Predicated region
        $region13: #{tpu_custom_call.1} parent=11 // pred_check
          %p179 = pneg %p96
        $region14: #{tpu_custom_call.1} parent=11 // pred_check_branch
          %181 = sbr.rel (%p179) target = $region16
        $region15: #{tpu_custom_call.1} parent=11 // pred_region
          %183 = vsyncadd [#allocation7], 0
          %s184 = sshll.u32 %s2, 4
          %s185 = int_to_ptr.hbm [resolvable:$true] %s184
          %s186 = sshll.u32 [#allocation8], 4
          %s187 = int_to_ptr.vmem [resolvable:$true] %s186
          %192 = dma.hbm_to_vmem [thread:$0]  %s185, 7168, %s187, [#allocation7], 64, 64, 4
        $region16: #{tpu_custom_call.1} parent=11 // pred_fallthru
          _
        // Predicated region
        $region17: #{tpu_custom_call.1} parent=11 // pred_check
          %p193 = pneg %p117
        $region18: #{tpu_custom_call.1} parent=11 // pred_check_branch
          %195 = sbr.rel (%p193) target = $region20
        $region19: #{tpu_custom_call.1} parent=11 // pred_region
          %197 = vsyncadd [#allocation10], 0
          %s198 = sshll.u32 %s3, 4
          %s199 = int_to_ptr.hbm [resolvable:$true] %s198
          %s200 = sshll.u32 [#allocation9], 4
          %s201 = int_to_ptr.vmem [resolvable:$true] %s200
          %206 = dma.hbm_to_vmem [thread:$0]  %s199, 256, %s201, [#allocation10], 128, 128, 8
        $region20: #{tpu_custom_call.1} parent=11 // pred_fallthru
          _
        // Predicated region
        $region21: #{tpu_custom_call.1} parent=11 // pred_check
          %p207 = pneg %p138
        $region22: #{tpu_custom_call.1} parent=11 // pred_check_branch
          %209 = sbr.rel (%p207) target = $region24
        $region23: #{tpu_custom_call.1} parent=11 // pred_region
          _
        $region24: #{tpu_custom_call.1} parent=11 // pred_fallthru
          _
      $region12: #{tpu_custom_call.1} parent=5 // pred_fallthru
        _
      %p210 = scmp.lt.s32.totalorder %s23, 2
      // Predicated region
      $region25: #{tpu_custom_call.1} parent=5 // pred_check
        %p211 = pneg %p210
      $region26: #{tpu_custom_call.1} parent=5 // pred_check_branch
        %213 = sbr.rel (%p211) target = $region28
      $region27: #{tpu_custom_call.1} parent=5 // pred_region
        // Predicated region
        $region29: #{tpu_custom_call.1} parent=27 // pred_check
          %p214 = pneg %p43
        $region30: #{tpu_custom_call.1} parent=27 // pred_check_branch
          %216 = sbr.rel (%p214) target = $region32
        $region31: #{tpu_custom_call.1} parent=27 // pred_region
          %s217 = sand.u32 %s33, 1
          %s218 = scalar_lea.sflag [#allocation4], %s217
          %s219 = sand.u32 %s33, 1
          %s220 = smul.addr %s219, 8
          %s221 = scalar_lea.vmem [#allocation3], %s220
          %223 = vsyncadd %s218, 0
          %s224 = smul.addr %s23, 8
          %s225 = scalar_lea.hbm %s0, %s224
          %s227 = sshll.u32 %s225, 4
          %s228 = int_to_ptr.hbm [resolvable:$true] %s227
          %s229 = sshll.u32 %s221, 4
          %s230 = int_to_ptr.vmem [resolvable:$true] %s229
          %232 = dma.hbm_to_vmem [thread:$0]  %s228, 128, %s230, %s218
        $region32: #{tpu_custom_call.1} parent=27 // pred_fallthru
          _
        // Predicated region
        $region33: #{tpu_custom_call.1} parent=27 // pred_check
          %p233 = pneg %p69
        $region34: #{tpu_custom_call.1} parent=27 // pred_check_branch
          %235 = sbr.rel (%p233) target = $region36
        $region35: #{tpu_custom_call.1} parent=27 // pred_region
          %s236 = sand.u32 %s23, 1
          %s237 = scalar_lea.sflag [#allocation7], %s236
          %s238 = sand.u32 %s59, 1
          %s239 = smul.addr %s238, 8
          %s240 = scalar_lea.vmem [#allocation6], %s239
          %242 = vsyncadd %s237, 0
          %s243 = smul.addr %s23, 8
          %s244 = scalar_lea.hbm %s1, %s243
          %s246 = sshll.u32 %s244, 4
          %s247 = int_to_ptr.hbm [resolvable:$true] %s246
          %s248 = sshll.u32 %s240, 4
          %s249 = int_to_ptr.vmem [resolvable:$true] %s248
          %251 = dma.hbm_to_vmem [thread:$0]  %s247, 128, %s249, %s237
        $region36: #{tpu_custom_call.1} parent=27 // pred_fallthru
          _
      $region28: #{tpu_custom_call.1} parent=5 // pred_fallthru
        _
      %p252 = scmp.le.s32.totalorder 1, %s23
      %p253 = scmp.lt.s32.totalorder %s23, 3
      %p254 = pnand %p252, %p253
      %p255 = pneg %p254
      // Predicated region
      $region37: #{tpu_custom_call.1} parent=5 // pred_check
        _
      $region38: #{tpu_custom_call.1} parent=5 // pred_check_branch
        %257 = sbr.rel (%p254) target = $region40
      $region39: #{tpu_custom_call.1} parent=5 // pred_region
        %s258 = ssub.s32 %s23, 1
        %s259 = sand.u32 %s36, 1
        %s260 = scalar_lea.sflag [#allocation4], %s259
        %s261 = sand.u32 %s36, 1
        %s262 = smul.addr %s261, 8
        %s263 = scalar_lea.vmem [#allocation3], %s262
        // Predicated region
        $region41: #{tpu_custom_call.1} parent=39 // pred_check
          %p264 = pneg %p49
        $region42: #{tpu_custom_call.1} parent=39 // pred_check_branch
          %266 = sbr.rel (%p264) target = $region44
        $region43: #{tpu_custom_call.1} parent=39 // pred_region
          %268 = dma.done %s260, 128
        $region44: #{tpu_custom_call.1} parent=39 // pred_fallthru
          _
        %s269 = sand.u32 %s28, 1
        %s270 = scalar_lea.sflag [#allocation7], %s269
        %s271 = sand.u32 %s62, 1
        %s272 = smul.addr %s271, 8
        %s273 = scalar_lea.vmem [#allocation6], %s272
        // Predicated region
        $region45: #{tpu_custom_call.1} parent=39 // pred_check
          %p274 = pneg %p75
        $region46: #{tpu_custom_call.1} parent=39 // pred_check_branch
          %276 = sbr.rel (%p274) target = $region48
        $region47: #{tpu_custom_call.1} parent=39 // pred_region
          %278 = dma.done %s270, 128
        $region48: #{tpu_custom_call.1} parent=39 // pred_fallthru
          _
        // Predicated region
        $region49: #{tpu_custom_call.1} parent=39 // pred_check
          %p279 = pneg %p96
        $region50: #{tpu_custom_call.1} parent=39 // pred_check_branch
          %281 = sbr.rel (%p279) target = $region52
        $region51: #{tpu_custom_call.1} parent=39 // pred_region
          %283 = dma.done [#allocation7], 7168
        $region52: #{tpu_custom_call.1} parent=39 // pred_fallthru
          _
        // Predicated region
        $region53: #{tpu_custom_call.1} parent=39 // pred_check
          %p284 = pneg %p117
        $region54: #{tpu_custom_call.1} parent=39 // pred_check_branch
          %286 = sbr.rel (%p284) target = $region56
        $region55: #{tpu_custom_call.1} parent=39 // pred_region
          %288 = dma.done [#allocation10], 256
        $region56: #{tpu_custom_call.1} parent=39 // pred_fallthru
          _
        %s289 = sand.u32 %s36, 1
        %s290 = scalar_lea.sflag [#allocation4], %s289
        %s291 = sand.u32 %s36, 1
        %s292 = smul.addr %s291, 8
        %s293 = scalar_lea.vmem [#allocation3], %s292
        %p294 = pneg %p49
        %p295 = pneg %p46
        %s296 = sand.u32 %s28, 1
        %s297 = scalar_lea.sflag [#allocation7], %s296
        %s298 = sand.u32 %s62, 1
        %s299 = smul.addr %s298, 8
        %s300 = scalar_lea.vmem [#allocation6], %s299
        %p301 = pneg %p75
        %p302 = pneg %p72
        %p303 = pneg %p96
        %p304 = pneg %p93
        %p305 = pneg %p117
        %p306 = pneg %p114
        %p307 = pneg %p138
        %p308 = pneg %p135
        %p309 = pneg %p164
        %p310 = pneg %p161
        %s311 = sand.u32 %s151, 1
        %s312 = scalar_lea.sflag [#allocation5], %s311
        %s313 = sand.u32 %s151, 1
        %s314 = scalar_lea.vmem [#allocation11], %s313
        %v316 = vld [vmem:[%s263] sm:$0xff]
        %v317 = vld [vmem:[%s273] sm:$0xff]
        %v318 = vpack.c.bf16 %v316, %v316
        %v319 = vpack.c.bf16 %v317, %v317
        %v320 = vld [vmem:[#allocation8] sm:$0xf]
        %v321 = vld [vmem:[#allocation8 + $0x4] sm:$0xf]
        %v322 = vld [vmem:[#allocation8 + $0x8] sm:$0xf]
        %v323 = vld [vmem:[#allocation8 + $0xc] sm:$0xf]
        %v324 = vld [vmem:[#allocation8 + $0x10] sm:$0xf]
        %v325 = vld [vmem:[#allocation8 + $0x14] sm:$0xf]
        %v326 = vld [vmem:[#allocation8 + $0x18] sm:$0xf]
        %v327 = vld [vmem:[#allocation8 + $0x1c] sm:$0xf]
        %v328 = vld [vmem:[#allocation8 + $0x20] sm:$0xf]
        %v329 = vld [vmem:[#allocation8 + $0x24] sm:$0xf]
        %v330 = vld [vmem:[#allocation8 + $0x28] sm:$0xf]
        %v331 = vld [vmem:[#allocation8 + $0x2c] sm:$0xf]
        %v332 = vld [vmem:[#allocation8 + $0x30] sm:$0xf]
        %v333 = vld [vmem:[#allocation8 + $0x34] sm:$0xf]
        %v334 = vld [vmem:[#allocation8 + $0x38] sm:$0xf]
        %v335 = vld [vmem:[#allocation8 + $0x3c] sm:$0xf]
        %v336 = vld [vmem:[#allocation9] sm:$0x1]
        %v337 = vperm.slane %v336, 0
        %v354 = vunpack.c.l.b16 %v320
        %v355 = vunpack.c.l.b16 %v321
        %v356 = vunpack.c.l.b16 %v322
        %v357 = vunpack.c.l.b16 %v323
        %v358 = vunpack.c.l.b16 %v324
        %v359 = vunpack.c.l.b16 %v325
        %v360 = vunpack.c.l.b16 %v326
        %v361 = vunpack.c.l.b16 %v327
        %v362 = vunpack.c.l.b16 %v328
        %v363 = vunpack.c.l.b16 %v329
        %v364 = vunpack.c.l.b16 %v330
        %v365 = vunpack.c.l.b16 %v331
        %v366 = vunpack.c.l.b16 %v332
        %v367 = vunpack.c.l.b16 %v333
        %v368 = vunpack.c.l.b16 %v334
        %v369 = vunpack.c.l.b16 %v335
        %v370 = vpack.c.b16 %v355, %v354
        %v371 = vpack.c.b16 %v357, %v356
        %v372 = vpack.c.b16 %v359, %v358
        %v373 = vpack.c.b16 %v361, %v360
        %v374 = vpack.c.b16 %v363, %v362
        %v375 = vpack.c.b16 %v365, %v364
        %v376 = vpack.c.b16 %v367, %v366
        %v377 = vpack.c.b16 %v369, %v368
        %386 = vmatpush.bf16.msra.mxu0 %v377
        %387 = vmatpush.bf16.msra.mxu0 %v376
        %388 = vmatpush.bf16.msra.mxu0 %v375
        %389 = vmatpush.bf16.msra.mxu0 %v374
        %390 = vmatpush.bf16.msra.mxu0 %v373
        %391 = vmatpush.bf16.msra.mxu0 %v372
        %392 = vmatpush.bf16.msra.mxu0 %v371
        %393 = vmatpush.bf16.msra.mxu0 %v370
        %394 = vmatmul.bf16.gmra.mxu0 %v319
        %v395 = vpop.f32.mrf.mxu0
        %v396 = vadd.f32 %v337, %v395
        %v397 = vpop.f32.mrf.mxu0
        %398 = vdwg.mxu0
        %v399 = vpack.c.bf16 %v396, %v396
        %s400 = scalar_lea.vmem [#allocation8], 64
        %v401 = vld [vmem:[%s400] sm:$0xf]
        %v402 = vld [vmem:[%s400 + $0x4] sm:$0xf]
        %v403 = vld [vmem:[%s400 + $0x8] sm:$0xf]
        %v404 = vld [vmem:[%s400 + $0xc] sm:$0xf]
        %v405 = vld [vmem:[%s400 + $0x10] sm:$0xf]
        %v406 = vld [vmem:[%s400 + $0x14] sm:$0xf]
        %v407 = vld [vmem:[%s400 + $0x18] sm:$0xf]
        %v408 = vld [vmem:[%s400 + $0x1c] sm:$0xf]
        %v409 = vld [vmem:[%s400 + $0x20] sm:$0xf]
        %v410 = vld [vmem:[%s400 + $0x24] sm:$0xf]
        %v411 = vld [vmem:[%s400 + $0x28] sm:$0xf]
        %v412 = vld [vmem:[%s400 + $0x2c] sm:$0xf]
        %v413 = vld [vmem:[%s400 + $0x30] sm:$0xf]
        %v414 = vld [vmem:[%s400 + $0x34] sm:$0xf]
        %v415 = vld [vmem:[%s400 + $0x38] sm:$0xf]
        %v416 = vld [vmem:[%s400 + $0x3c] sm:$0xf]
        %v417 = vld [vmem:[#allocation9 + $0x1] sm:$0x1]
        %v418 = vperm.slane %v417, 0
        %v435 = vunpack.c.l.b16 %v401
        %v436 = vunpack.c.l.b16 %v402
        %v437 = vunpack.c.l.b16 %v403
        %v438 = vunpack.c.l.b16 %v404
        %v439 = vunpack.c.l.b16 %v405
        %v440 = vunpack.c.l.b16 %v406
        %v441 = vunpack.c.l.b16 %v407
        %v442 = vunpack.c.l.b16 %v408
        %v443 = vunpack.c.l.b16 %v409
        %v444 = vunpack.c.l.b16 %v410
        %v445 = vunpack.c.l.b16 %v411
        %v446 = vunpack.c.l.b16 %v412
        %v447 = vunpack.c.l.b16 %v413
        %v448 = vunpack.c.l.b16 %v414
        %v449 = vunpack.c.l.b16 %v415
        %v450 = vunpack.c.l.b16 %v416
        %v451 = vpack.c.b16 %v436, %v435
        %v452 = vpack.c.b16 %v438, %v437
        %v453 = vpack.c.b16 %v440, %v439
        %v454 = vpack.c.b16 %v442, %v441
        %v455 = vpack.c.b16 %v444, %v443
        %v456 = vpack.c.b16 %v446, %v445
        %v457 = vpack.c.b16 %v448, %v447
        %v458 = vpack.c.b16 %v450, %v449
        %467 = vmatpush.bf16.msra.mxu0 %v458
        %468 = vmatpush.bf16.msra.mxu0 %v457
        %469 = vmatpush.bf16.msra.mxu0 %v456
        %470 = vmatpush.bf16.msra.mxu0 %v455
        %471 = vmatpush.bf16.msra.mxu0 %v454
        %472 = vmatpush.bf16.msra.mxu0 %v453
        %473 = vmatpush.bf16.msra.mxu0 %v452
        %474 = vmatpush.bf16.msra.mxu0 %v451
        %475 = vmatmul.bf16.gmra.mxu0 %v399
        %v476 = vpop.f32.mrf.mxu0
        %v477 = vadd.f32 %v418, %v476
        %v478 = vpop.f32.mrf.mxu0
        %479 = vdwg.mxu0
        %s480 = scalar_lea.vmem [#allocation8], 128
        %v481 = vld [vmem:[%s480] sm:$0xf]
        %v482 = vld [vmem:[%s480 + $0x4] sm:$0xf]
        %v483 = vld [vmem:[%s480 + $0x8] sm:$0xf]
        %v484 = vld [vmem:[%s480 + $0xc] sm:$0xf]
        %v485 = vld [vmem:[%s480 + $0x10] sm:$0xf]
        %v486 = vld [vmem:[%s480 + $0x14] sm:$0xf]
        %v487 = vld [vmem:[%s480 + $0x18] sm:$0xf]
        %v488 = vld [vmem:[%s480 + $0x1c] sm:$0xf]
        %v489 = vld [vmem:[%s480 + $0x20] sm:$0xf]
        %v490 = vld [vmem:[%s480 + $0x24] sm:$0xf]
        %v491 = vld [vmem:[%s480 + $0x28] sm:$0xf]
        %v492 = vld [vmem:[%s480 + $0x2c] sm:$0xf]
        %v493 = vld [vmem:[%s480 + $0x30] sm:$0xf]
        %v494 = vld [vmem:[%s480 + $0x34] sm:$0xf]
        %v495 = vld [vmem:[%s480 + $0x38] sm:$0xf]
        %v496 = vld [vmem:[%s480 + $0x3c] sm:$0xf]
        %v497 = vld [vmem:[#allocation9 + $0x2] sm:$0x1]
        %v498 = vperm.slane %v497, 0
        %v515 = vunpack.c.l.b16 %v481
        %v516 = vunpack.c.l.b16 %v482
        %v517 = vunpack.c.l.b16 %v483
        %v518 = vunpack.c.l.b16 %v484
        %v519 = vunpack.c.l.b16 %v485
        %v520 = vunpack.c.l.b16 %v486
        %v521 = vunpack.c.l.b16 %v487
        %v522 = vunpack.c.l.b16 %v488
        %v523 = vunpack.c.l.b16 %v489
        %v524 = vunpack.c.l.b16 %v490
        %v525 = vunpack.c.l.b16 %v491
        %v526 = vunpack.c.l.b16 %v492
        %v527 = vunpack.c.l.b16 %v493
        %v528 = vunpack.c.l.b16 %v494
        %v529 = vunpack.c.l.b16 %v495
        %v530 = vunpack.c.l.b16 %v496
        %v531 = vpack.c.b16 %v516, %v515
        %v532 = vpack.c.b16 %v518, %v517
        %v533 = vpack.c.b16 %v520, %v519
        %v534 = vpack.c.b16 %v522, %v521
        %v535 = vpack.c.b16 %v524, %v523
        %v536 = vpack.c.b16 %v526, %v525
        %v537 = vpack.c.b16 %v528, %v527
        %v538 = vpack.c.b16 %v530, %v529
        %547 = vmatpush.bf16.msra.mxu0 %v538
        %548 = vmatpush.bf16.msra.mxu0 %v537
        %549 = vmatpush.bf16.msra.mxu0 %v536
        %550 = vmatpush.bf16.msra.mxu0 %v535
        %551 = vmatpush.bf16.msra.mxu0 %v534
        %552 = vmatpush.bf16.msra.mxu0 %v533
        %553 = vmatpush.bf16.msra.mxu0 %v532
        %554 = vmatpush.bf16.msra.mxu0 %v531
        %555 = vmatmul.bf16.gmra.mxu0 %v318
        %v556 = vpop.f32.mrf.mxu0
        %v557 = vadd.f32 %v498, %v556
        %v558 = vpop.f32.mrf.mxu0
        %559 = vdwg.mxu0
        %s560 = scalar_lea.vmem [#allocation8], 192
        %v561 = vld [vmem:[%s560] sm:$0xf]
        %v562 = vld [vmem:[%s560 + $0x4] sm:$0xf]
        %v563 = vld [vmem:[%s560 + $0x8] sm:$0xf]
        %v564 = vld [vmem:[%s560 + $0xc] sm:$0xf]
        %v565 = vld [vmem:[%s560 + $0x10] sm:$0xf]
        %v566 = vld [vmem:[%s560 + $0x14] sm:$0xf]
        %v567 = vld [vmem:[%s560 + $0x18] sm:$0xf]
        %v568 = vld [vmem:[%s560 + $0x1c] sm:$0xf]
        %v569 = vld [vmem:[%s560 + $0x20] sm:$0xf]
        %v570 = vld [vmem:[%s560 + $0x24] sm:$0xf]
        %v571 = vld [vmem:[%s560 + $0x28] sm:$0xf]
        %v572 = vld [vmem:[%s560 + $0x2c] sm:$0xf]
        %v573 = vld [vmem:[%s560 + $0x30] sm:$0xf]
        %v574 = vld [vmem:[%s560 + $0x34] sm:$0xf]
        %v575 = vld [vmem:[%s560 + $0x38] sm:$0xf]
        %v576 = vld [vmem:[%s560 + $0x3c] sm:$0xf]
        %v577 = vld [vmem:[#allocation9 + $0x3] sm:$0x1]
        %v578 = vperm.slane %v577, 0
        %v595 = vunpack.c.l.b16 %v561
        %v596 = vunpack.c.l.b16 %v562
        %v597 = vunpack.c.l.b16 %v563
        %v598 = vunpack.c.l.b16 %v564
        %v599 = vunpack.c.l.b16 %v565
        %v600 = vunpack.c.l.b16 %v566
        %v601 = vunpack.c.l.b16 %v567
        %v602 = vunpack.c.l.b16 %v568
        %v603 = vunpack.c.l.b16 %v569
        %v604 = vunpack.c.l.b16 %v570
        %v605 = vunpack.c.l.b16 %v571
        %v606 = vunpack.c.l.b16 %v572
        %v607 = vunpack.c.l.b16 %v573
        %v608 = vunpack.c.l.b16 %v574
        %v609 = vunpack.c.l.b16 %v575
        %v610 = vunpack.c.l.b16 %v576
        %v611 = vpack.c.b16 %v596, %v595
        %v612 = vpack.c.b16 %v598, %v597
        %v613 = vpack.c.b16 %v600, %v599
        %v614 = vpack.c.b16 %v602, %v601
        %v615 = vpack.c.b16 %v604, %v603
        %v616 = vpack.c.b16 %v606, %v605
        %v617 = vpack.c.b16 %v608, %v607
        %v618 = vpack.c.b16 %v610, %v609
        %627 = vmatpush.bf16.msra.mxu0 %v618
        %628 = vmatpush.bf16.msra.mxu0 %v617
        %629 = vmatpush.bf16.msra.mxu0 %v616
        %630 = vmatpush.bf16.msra.mxu0 %v615
        %631 = vmatpush.bf16.msra.mxu0 %v614
        %632 = vmatpush.bf16.msra.mxu0 %v613
        %633 = vmatpush.bf16.msra.mxu0 %v612
        %634 = vmatpush.bf16.msra.mxu0 %v611
        %635 = vmatmul.bf16.gmra.mxu0 %v318
        %v636 = vpop.f32.mrf.mxu0
        %v637 = vadd.f32 %v578, %v636
        %v638 = vpop.f32.mrf.mxu0
        %639 = vdwg.mxu0
        %v640 = vlaneseq
        %v641 = vshrl.u32 %v640, 7
        %v642 = vlaneseq
        %v643 = vand.u32 %v642, 127
        %vm644 = vcmp.gt.s32.totalorder %v643, %v641
        %v645 = vsel %vm644, -1e+30, 0.0
        %s646 = scalar_lea.vmem [#allocation8], 256
        %v647 = vld [vmem:[%s646] sm:$0xf]
        %v648 = vld [vmem:[%s646 + $0x4] sm:$0xf]
        %v649 = vld [vmem:[%s646 + $0x8] sm:$0xf]
        %v650 = vld [vmem:[%s646 + $0xc] sm:$0xf]
        %v651 = vld [vmem:[%s646 + $0x10] sm:$0xf]
        %v652 = vld [vmem:[%s646 + $0x14] sm:$0xf]
        %v653 = vld [vmem:[%s646 + $0x18] sm:$0xf]
        %v654 = vld [vmem:[%s646 + $0x1c] sm:$0xf]
        %v655 = vld [vmem:[%s646 + $0x20] sm:$0xf]
        %v656 = vld [vmem:[%s646 + $0x24] sm:$0xf]
        %v657 = vld [vmem:[%s646 + $0x28] sm:$0xf]
        %v658 = vld [vmem:[%s646 + $0x2c] sm:$0xf]
        %v659 = vld [vmem:[%s646 + $0x30] sm:$0xf]
        %v660 = vld [vmem:[%s646 + $0x34] sm:$0xf]
        %v661 = vld [vmem:[%s646 + $0x38] sm:$0xf]
        %v662 = vld [vmem:[%s646 + $0x3c] sm:$0xf]
        %v663 = vld [vmem:[#allocation9 + $0x4] sm:$0x1]
        %v664 = vpack.c.bf16 %v477, %v477
        %v665 = vpack.c.bf16 %v557, %v557
        %v666 = vpack.c.bf16 %v637, %v637
        %vm667 = vcmask 261120
        %v669 = vsel %vm667, %v664, 0
        %v672 = vsel %vm667, %v665, 0
        %674 = vmatpush.bf16.xpose.msra.mxu0 0
        %675 = vmatpush.bf16.xpose.msra.mxu0 0
        %676 = vmatpush.bf16.xpose.msra.mxu0 0
        %677 = vmatpush.bf16.xpose.msra.mxu0 0
        %678 = vmatpush.bf16.xpose.msra.mxu0 0
        %679 = vmatpush.bf16.xpose.msra.mxu0 0
        %680 = vmatpush.bf16.xpose.msra.mxu0 0
        %681 = vmatpush.bf16.xpose.msra.mxu0 %v672
        %682 = vmatmul.bf16.gmra.mxu0 %v669
        %v683 = vpop.f32.mrf.mxu0
        %v684 = vadd.f32 %v645, %v683
        %v685 = vpop.f32.mrf.mxu0
        %686 = vdwg.mxu0
        %vm687 = vcmask 64512
        %v688 = vsel %vm687, %v684, -inf
        %689 = vmax.xlane.f32.xlu0 %v688
        %v690 = vpop.xlane.xlu0 %689
        %v691 = vsub.f32 %v684, %v690
        %v692 = vmul.f32 %v691, 1.442695
        %v693 = vpow.pop %v692
        %v694 = vsel %vm687, %v693, 0.0
        %695 = vadd.xlane.f32.xlu0 %v694
        %v696 = vpop.xlane.xlu0 %695
        %v697 = vrcp.pop %v696
        %v698 = vmul.f32 %v693, %v697
        %v699 = vpack.c.bf16 %v698, %v698
        %v701 = vsel %vm687, %v699, 0
        %vm703 = vcmask 1043456
        %v705 = vsel %vm703, %v666, 0
        %707 = vmatpush.bf16.msra.mxu0 0
        %708 = vmatpush.bf16.msra.mxu0 0
        %709 = vmatpush.bf16.msra.mxu0 0
        %710 = vmatpush.bf16.msra.mxu0 0
        %711 = vmatpush.bf16.msra.mxu0 0
        %712 = vmatpush.bf16.msra.mxu0 0
        %713 = vmatpush.bf16.msra.mxu0 0
        %714 = vmatpush.bf16.msra.mxu0 %v705
        %715 = vmatmul.bf16.gmra.mxu0 %v701
        %v716 = vpop.f32.mrf.mxu0
        %v717 = vadd.f32 0.0, %v716
        %v718 = vpop.f32.mrf.mxu0
        %719 = vdwg.mxu0
        %v720 = vpack.c.bf16 %v717, %v717
        %v725 = vunpack.c.l.b16 %v647
        %v726 = vunpack.c.l.b16 %v648
        %v727 = vunpack.c.l.b16 %v649
        %v728 = vunpack.c.l.b16 %v650
        %v729 = vpack.c.b16 %v726, %v725
        %v730 = vpack.c.b16 %v728, %v727
        %v734 = vsel %vm667, %v720, 0
        %736 = vmatpush.bf16.msra.mxu0 0
        %737 = vmatpush.bf16.msra.mxu0 0
        %738 = vmatpush.bf16.msra.mxu0 0
        %739 = vmatpush.bf16.msra.mxu0 0
        %740 = vmatpush.bf16.msra.mxu0 0
        %741 = vmatpush.bf16.msra.mxu0 0
        %742 = vmatpush.bf16.msra.mxu0 %v730
        %743 = vmatpush.bf16.msra.mxu0 %v729
        %744 = vmatmul.bf16.gmra.mxu0 %v734
        %v745 = vpop.f32.mrf.mxu0
        %v746 = vadd.f32 0.0, %v745
        %v747 = vpop.f32.mrf.mxu0
        %748 = vdwg.mxu0
        %v749 = vperm.slane %v663, 0
        %v750 = vadd.f32 %v749, %v746
        %v752 = vunpack.c.l.b16 %v664
        %v753 = vpack.c.b16 %v752, %v752
        %754 = vrot.lane.b32.xlu0 %v753, 96
        %v755 = vpop.permute.xlu0 %754
        %v757 = vunpack.c.l.b16 %v665
        %v758 = vpack.c.b16 %v757, %v757
        %759 = vrot.lane.b32.xlu0 %v758, 96
        %v760 = vpop.permute.xlu0 %759
        %v762 = vsel %vm667, %v755, 0
        %v765 = vsel %vm667, %v760, 0
        %767 = vmatpush.bf16.xpose.msra.mxu0 0
        %768 = vmatpush.bf16.xpose.msra.mxu0 0
        %769 = vmatpush.bf16.xpose.msra.mxu0 0
        %770 = vmatpush.bf16.xpose.msra.mxu0 0
        %771 = vmatpush.bf16.xpose.msra.mxu0 0
        %772 = vmatpush.bf16.xpose.msra.mxu0 0
        %773 = vmatpush.bf16.xpose.msra.mxu0 0
        %774 = vmatpush.bf16.xpose.msra.mxu0 %v765
        %775 = vmatmul.bf16.gmra.mxu0 %v762
        %v776 = vpop.f32.mrf.mxu0
        %v777 = vadd.f32 %v645, %v776
        %v778 = vpop.f32.mrf.mxu0
        %779 = vdwg.mxu0
        %v780 = vsel %vm687, %v777, -inf
        %781 = vmax.xlane.f32.xlu0 %v780
        %v782 = vpop.xlane.xlu0 %781
        %v783 = vsub.f32 %v777, %v782
        %v784 = vmul.f32 %v783, 1.442695
        %v785 = vpow.pop %v784
        %v786 = vsel %vm687, %v785, 0.0
        %787 = vadd.xlane.f32.xlu0 %v786
        %v788 = vpop.xlane.xlu0 %787
        %v789 = vrcp.pop %v788
        %v790 = vmul.f32 %v785, %v789
        %v791 = vpack.c.bf16 %v790, %v790
        %v793 = vunpack.c.l.b16 %v666
        %v794 = vpack.c.b16 %v793, %v793
        %795 = vrot.lane.b32.xlu0 %v794, 96
        %v796 = vpop.permute.xlu0 %795
        %v798 = vsel %vm687, %v791, 0
        %v801 = vsel %vm703, %v796, 0
        %803 = vmatpush.bf16.msra.mxu0 0
        %804 = vmatpush.bf16.msra.mxu0 0
        %805 = vmatpush.bf16.msra.mxu0 0
        %806 = vmatpush.bf16.msra.mxu0 0
        %807 = vmatpush.bf16.msra.mxu0 0
        %808 = vmatpush.bf16.msra.mxu0 0
        %809 = vmatpush.bf16.msra.mxu0 0
        %810 = vmatpush.bf16.msra.mxu0 %v801
        %811 = vmatmul.bf16.gmra.mxu0 %v798
        %v812 = vpop.f32.mrf.mxu0
        %v813 = vadd.f32 0.0, %v812
        %v814 = vpop.f32.mrf.mxu0
        %815 = vdwg.mxu0
        %v816 = vpack.c.bf16 %v813, %v813
        %v821 = vunpack.c.l.b16 %v651
        %v822 = vunpack.c.l.b16 %v652
        %v823 = vunpack.c.l.b16 %v653
        %v824 = vunpack.c.l.b16 %v654
        %v825 = vpack.c.b16 %v822, %v821
        %v826 = vpack.c.b16 %v824, %v823
        %v830 = vsel %vm667, %v816, 0
        %832 = vmatpush.bf16.msra.mxu0 0
        %833 = vmatpush.bf16.msra.mxu0 0
        %834 = vmatpush.bf16.msra.mxu0 0
        %835 = vmatpush.bf16.msra.mxu0 0
        %836 = vmatpush.bf16.msra.mxu0 0
        %837 = vmatpush.bf16.msra.mxu0 0
        %838 = vmatpush.bf16.msra.mxu0 %v826
        %839 = vmatpush.bf16.msra.mxu0 %v825
        %840 = vmatmul.bf16.gmra.mxu0 %v830
        %v841 = vpop.f32.mrf.mxu0
        %v842 = vadd.f32 0.0, %v841
        %v843 = vpop.f32.mrf.mxu0
        %844 = vdwg.mxu0
        %v845 = vadd.f32 %v750, %v842
        %846 = vrot.lane.b32.xlu0 %v753, 64
        %v847 = vpop.permute.xlu0 %846
        %848 = vrot.lane.b32.xlu0 %v758, 64
        %v849 = vpop.permute.xlu0 %848
        %v851 = vsel %vm667, %v847, 0
        %v854 = vsel %vm667, %v849, 0
        %856 = vmatpush.bf16.xpose.msra.mxu0 0
        %857 = vmatpush.bf16.xpose.msra.mxu0 0
        %858 = vmatpush.bf16.xpose.msra.mxu0 0
        %859 = vmatpush.bf16.xpose.msra.mxu0 0
        %860 = vmatpush.bf16.xpose.msra.mxu0 0
        %861 = vmatpush.bf16.xpose.msra.mxu0 0
        %862 = vmatpush.bf16.xpose.msra.mxu0 0
        %863 = vmatpush.bf16.xpose.msra.mxu0 %v854
        %864 = vmatmul.bf16.gmra.mxu0 %v851
        %v865 = vpop.f32.mrf.mxu0
        %v866 = vadd.f32 %v645, %v865
        %v867 = vpop.f32.mrf.mxu0
        %868 = vdwg.mxu0
        %v869 = vsel %vm687, %v866, -inf
        %870 = vmax.xlane.f32.xlu0 %v869
        %v871 = vpop.xlane.xlu0 %870
        %v872 = vsub.f32 %v866, %v871
        %v873 = vmul.f32 %v872, 1.442695
        %v874 = vpow.pop %v873
        %v875 = vsel %vm687, %v874, 0.0
        %876 = vadd.xlane.f32.xlu0 %v875
        %v877 = vpop.xlane.xlu0 %876
        %v878 = vrcp.pop %v877
        %v879 = vmul.f32 %v874, %v878
        %v880 = vpack.c.bf16 %v879, %v879
        %881 = vrot.lane.b32.xlu0 %v794, 64
        %v882 = vpop.permute.xlu0 %881
        %v884 = vsel %vm687, %v880, 0
        %v887 = vsel %vm703, %v882, 0
        %889 = vmatpush.bf16.msra.mxu0 0
        %890 = vmatpush.bf16.msra.mxu0 0
        %891 = vmatpush.bf16.msra.mxu0 0
        %892 = vmatpush.bf16.msra.mxu0 0
        %893 = vmatpush.bf16.msra.mxu0 0
        %894 = vmatpush.bf16.msra.mxu0 0
        %895 = vmatpush.bf16.msra.mxu0 0
        %896 = vmatpush.bf16.msra.mxu0 %v887
        %897 = vmatmul.bf16.gmra.mxu0 %v884
        %v898 = vpop.f32.mrf.mxu0
        %v899 = vadd.f32 0.0, %v898
        %v900 = vpop.f32.mrf.mxu0
        %901 = vdwg.mxu0
        %v902 = vpack.c.bf16 %v899, %v899
        %v907 = vunpack.c.l.b16 %v655
        %v908 = vunpack.c.l.b16 %v656
        %v909 = vunpack.c.l.b16 %v657
        %v910 = vunpack.c.l.b16 %v658
        %v911 = vpack.c.b16 %v908, %v907
        %v912 = vpack.c.b16 %v910, %v909
        %v916 = vsel %vm667, %v902, 0
        %918 = vmatpush.bf16.msra.mxu0 0
        %919 = vmatpush.bf16.msra.mxu0 0
        %920 = vmatpush.bf16.msra.mxu0 0
        %921 = vmatpush.bf16.msra.mxu0 0
        %922 = vmatpush.bf16.msra.mxu0 0
        %923 = vmatpush.bf16.msra.mxu0 0
        %924 = vmatpush.bf16.msra.mxu0 %v912
        %925 = vmatpush.bf16.msra.mxu0 %v911
        %926 = vmatmul.bf16.gmra.mxu0 %v916
        %v927 = vpop.f32.mrf.mxu0
        %v928 = vadd.f32 0.0, %v927
        %v929 = vpop.f32.mrf.mxu0
        %930 = vdwg.mxu0
        %v931 = vadd.f32 %v845, %v928
        %932 = vrot.lane.b32.xlu0 %v753, 32
        %v933 = vpop.permute.xlu0 %932
        %934 = vrot.lane.b32.xlu0 %v758, 32
        %v935 = vpop.permute.xlu0 %934
        %v937 = vsel %vm667, %v933, 0
        %v940 = vsel %vm667, %v935, 0
        %942 = vmatpush.bf16.xpose.msra.mxu0 0
        %943 = vmatpush.bf16.xpose.msra.mxu0 0
        %944 = vmatpush.bf16.xpose.msra.mxu0 0
        %945 = vmatpush.bf16.xpose.msra.mxu0 0
        %946 = vmatpush.bf16.xpose.msra.mxu0 0
        %947 = vmatpush.bf16.xpose.msra.mxu0 0
        %948 = vmatpush.bf16.xpose.msra.mxu0 0
        %949 = vmatpush.bf16.xpose.msra.mxu0 %v940
        %950 = vmatmul.bf16.gmra.mxu0 %v937
        %v951 = vpop.f32.mrf.mxu0
        %v952 = vadd.f32 %v645, %v951
        %v953 = vpop.f32.mrf.mxu0
        %954 = vdwg.mxu0
        %v955 = vsel %vm687, %v952, -inf
        %956 = vmax.xlane.f32.xlu0 %v955
        %v957 = vpop.xlane.xlu0 %956
        %v958 = vsub.f32 %v952, %v957
        %v959 = vmul.f32 %v958, 1.442695
        %v960 = vpow.pop %v959
        %v961 = vsel %vm687, %v960, 0.0
        %962 = vadd.xlane.f32.xlu0 %v961
        %v963 = vpop.xlane.xlu0 %962
        %v964 = vrcp.pop %v963
        %v965 = vmul.f32 %v960, %v964
        %v966 = vpack.c.bf16 %v965, %v965
        %967 = vrot.lane.b32.xlu0 %v794, 32
        %v968 = vpop.permute.xlu0 %967
        %v970 = vsel %vm687, %v966, 0
        %v973 = vsel %vm703, %v968, 0
        %975 = vmatpush.bf16.msra.mxu0 0
        %976 = vmatpush.bf16.msra.mxu0 0
        %977 = vmatpush.bf16.msra.mxu0 0
        %978 = vmatpush.bf16.msra.mxu0 0
        %979 = vmatpush.bf16.msra.mxu0 0
        %980 = vmatpush.bf16.msra.mxu0 0
        %981 = vmatpush.bf16.msra.mxu0 0
        %982 = vmatpush.bf16.msra.mxu0 %v973
        %983 = vmatmul.bf16.gmra.mxu0 %v970
        %v984 = vpop.f32.mrf.mxu0
        %v985 = vadd.f32 0.0, %v984
        %v986 = vpop.f32.mrf.mxu0
        %987 = vdwg.mxu0
        %v988 = vpack.c.bf16 %v985, %v985
        %v993 = vunpack.c.l.b16 %v659
        %v994 = vunpack.c.l.b16 %v660
        %v995 = vunpack.c.l.b16 %v661
        %v996 = vunpack.c.l.b16 %v662
        %v997 = vpack.c.b16 %v994, %v993
        %v998 = vpack.c.b16 %v996, %v995
        %v1002 = vsel %vm667, %v988, 0
        %1004 = vmatpush.bf16.msra.mxu0 0
        %1005 = vmatpush.bf16.msra.mxu0 0
        %1006 = vmatpush.bf16.msra.mxu0 0
        %1007 = vmatpush.bf16.msra.mxu0 0
        %1008 = vmatpush.bf16.msra.mxu0 0
        %1009 = vmatpush.bf16.msra.mxu0 0
        %1010 = vmatpush.bf16.msra.mxu0 %v998
        %1011 = vmatpush.bf16.msra.mxu0 %v997
        %1012 = vmatmul.bf16.gmra.mxu0 %v1002
        %v1013 = vpop.f32.mrf.mxu0
        %v1014 = vadd.f32 0.0, %v1013
        %v1015 = vpop.f32.mrf.mxu0
        %1016 = vdwg.mxu0
        %v1017 = vadd.f32 %v931, %v1014
        %v1018 = vadd.f32 %v396, %v1017
        %v1019 = vld [vmem:[#allocation9 + $0x5] sm:$0x1]
        %v1020 = vld [vmem:[#allocation9 + $0x6] sm:$0x1]
        %1021 = vadd.xlane.f32.xlu0 %v1018
        %v1022 = vpop.xlane.xlu0 %1021
        %v1023 = vrcp.pop 128.0
        %v1024 = vmul.f32 128.0, %v1023
        %v1025 = vsub.f32 1.0, %v1024
        %v1026 = vmul.f32 %v1023, %v1025
        %v1027 = vadd.f32 %v1023, %v1026
        %vm1028 = vweird.f32 %v1023
        %v1029 = vsel %vm1028, %v1023, %v1027
        %v1030 = vmul.f32 %v1022, %v1029
        %v1031 = vsub.f32 %v1018, %v1030
        %v1032 = vmul.f32 %v1031, %v1031
        %1033 = vadd.xlane.f32.xlu0 %v1032
        %v1034 = vpop.xlane.xlu0 %1033
        %v1035 = vmul.f32 %v1034, %v1029
        %v1036 = vadd.f32 %v1035, 1e-05
        %v1037 = vrsqrt.pop %v1036
        %v1038 = vmul.f32 %v1037, %v1036
        %v1039 = vmul.f32 %v1038, %v1037
        %v1040 = vmul.f32 0.5, %v1039
        %v1041 = vsub.f32 1.5, %v1040
        %v1042 = vmul.f32 %v1037, %v1041
        %vm1043 = vweird.f32 %v1036
        %vm1044 = vweird.f32 %v1037
        %vm1045 = vmor %vm1043, %vm1044
        %v1046 = vsel %vm1045, %v1037, %v1042
        %v1047 = vmul.f32 %v1031, %v1046
        %v1048 = vperm.slane %v1019, 0
        %v1049 = vmul.f32 %v1047, %v1048
        %v1050 = vperm.slane %v1020, 0
        %v1051 = vadd.f32 %v1049, %v1050
        %v1052 = vpack.c.bf16 %v1051, %v1051
        %s1053 = scalar_lea.vmem [#allocation8], 320
        %v1054 = vld [vmem:[%s1053] sm:$0xf]
        %v1055 = vld [vmem:[%s1053 + $0x4] sm:$0xf]
        %v1056 = vld [vmem:[%s1053 + $0x8] sm:$0xf]
        %v1057 = vld [vmem:[%s1053 + $0xc] sm:$0xf]
        %v1058 = vld [vmem:[%s1053 + $0x10] sm:$0xf]
        %v1059 = vld [vmem:[%s1053 + $0x14] sm:$0xf]
        %v1060 = vld [vmem:[%s1053 + $0x18] sm:$0xf]
        %v1061 = vld [vmem:[%s1053 + $0x1c] sm:$0xf]
        %v1062 = vld [vmem:[%s1053 + $0x20] sm:$0xf]
        %v1063 = vld [vmem:[%s1053 + $0x24] sm:$0xf]
        %v1064 = vld [vmem:[%s1053 + $0x28] sm:$0xf]
        %v1065 = vld [vmem:[%s1053 + $0x2c] sm:$0xf]
        %v1066 = vld [vmem:[%s1053 + $0x30] sm:$0xf]
        %v1067 = vld [vmem:[%s1053 + $0x34] sm:$0xf]
        %v1068 = vld [vmem:[%s1053 + $0x38] sm:$0xf]
        %v1069 = vld [vmem:[%s1053 + $0x3c] sm:$0xf]
        %v1070 = vld [vmem:[#allocation9 + $0x7] sm:$0x1]
        %v1071 = vperm.slane %v1070, 0
        %v1088 = vunpack.c.l.b16 %v1054
        %v1089 = vunpack.c.l.b16 %v1055
        %v1090 = vunpack.c.l.b16 %v1056
        %v1091 = vunpack.c.l.b16 %v1057
        %v1092 = vunpack.c.l.b16 %v1058
        %v1093 = vunpack.c.l.b16 %v1059
        %v1094 = vunpack.c.l.b16 %v1060
        %v1095 = vunpack.c.l.b16 %v1061
        %v1096 = vunpack.c.l.b16 %v1062
        %v1097 = vunpack.c.l.b16 %v1063
        %v1098 = vunpack.c.l.b16 %v1064
        %v1099 = vunpack.c.l.b16 %v1065
        %v1100 = vunpack.c.l.b16 %v1066
        %v1101 = vunpack.c.l.b16 %v1067
        %v1102 = vunpack.c.l.b16 %v1068
        %v1103 = vunpack.c.l.b16 %v1069
        %v1104 = vpack.c.b16 %v1089, %v1088
        %v1105 = vpack.c.b16 %v1091, %v1090
        %v1106 = vpack.c.b16 %v1093, %v1092
        %v1107 = vpack.c.b16 %v1095, %v1094
        %v1108 = vpack.c.b16 %v1097, %v1096
        %v1109 = vpack.c.b16 %v1099, %v1098
        %v1110 = vpack.c.b16 %v1101, %v1100
        %v1111 = vpack.c.b16 %v1103, %v1102
        %1120 = vmatpush.bf16.msra.mxu0 %v1111
        %1121 = vmatpush.bf16.msra.mxu0 %v1110
        %1122 = vmatpush.bf16.msra.mxu0 %v1109
        %1123 = vmatpush.bf16.msra.mxu0 %v1108
        %1124 = vmatpush.bf16.msra.mxu0 %v1107
        %1125 = vmatpush.bf16.msra.mxu0 %v1106
        %1126 = vmatpush.bf16.msra.mxu0 %v1105
        %1127 = vmatpush.bf16.msra.mxu0 %v1104
        %1128 = vmatmul.bf16.gmra.mxu0 %v1052
        %v1129 = vpop.f32.mrf.mxu0
        %v1130 = vadd.f32 %v1071, %v1129
        %v1131 = vpop.f32.mrf.mxu0
        %1132 = vdwg.mxu0
        %v1133 = vmax.f32 %v1130, 0.0
        %v1134 = vpack.c.bf16 %v1133, %v1133
        %s1135 = scalar_lea.vmem [#allocation8], 384
        %v1136 = vld [vmem:[%s1135] sm:$0xf]
        %v1137 = vld [vmem:[%s1135 + $0x4] sm:$0xf]
        %v1138 = vld [vmem:[%s1135 + $0x8] sm:$0xf]
        %v1139 = vld [vmem:[%s1135 + $0xc] sm:$0xf]
        %v1140 = vld [vmem:[%s1135 + $0x10] sm:$0xf]
        %v1141 = vld [vmem:[%s1135 + $0x14] sm:$0xf]
        %v1142 = vld [vmem:[%s1135 + $0x18] sm:$0xf]
        %v1143 = vld [vmem:[%s1135 + $0x1c] sm:$0xf]
        %v1144 = vld [vmem:[%s1135 + $0x20] sm:$0xf]
        %v1145 = vld [vmem:[%s1135 + $0x24] sm:$0xf]
        %v1146 = vld [vmem:[%s1135 + $0x28] sm:$0xf]
        %v1147 = vld [vmem:[%s1135 + $0x2c] sm:$0xf]
        %v1148 = vld [vmem:[%s1135 + $0x30] sm:$0xf]
        %v1149 = vld [vmem:[%s1135 + $0x34] sm:$0xf]
        %v1150 = vld [vmem:[%s1135 + $0x38] sm:$0xf]
        %v1151 = vld [vmem:[%s1135 + $0x3c] sm:$0xf]
        %v1152 = vld [vmem:[#allocation9 + $0x8] sm:$0x1]
        %v1153 = vperm.slane %v1152, 0
        %v1170 = vunpack.c.l.b16 %v1136
        %v1171 = vunpack.c.l.b16 %v1137
        %v1172 = vunpack.c.l.b16 %v1138
        %v1173 = vunpack.c.l.b16 %v1139
        %v1174 = vunpack.c.l.b16 %v1140
        %v1175 = vunpack.c.l.b16 %v1141
        %v1176 = vunpack.c.l.b16 %v1142
        %v1177 = vunpack.c.l.b16 %v1143
        %v1178 = vunpack.c.l.b16 %v1144
        %v1179 = vunpack.c.l.b16 %v1145
        %v1180 = vunpack.c.l.b16 %v1146
        %v1181 = vunpack.c.l.b16 %v1147
        %v1182 = vunpack.c.l.b16 %v1148
        %v1183 = vunpack.c.l.b16 %v1149
        %v1184 = vunpack.c.l.b16 %v1150
        %v1185 = vunpack.c.l.b16 %v1151
        %v1186 = vpack.c.b16 %v1171, %v1170
        %v1187 = vpack.c.b16 %v1173, %v1172
        %v1188 = vpack.c.b16 %v1175, %v1174
        %v1189 = vpack.c.b16 %v1177, %v1176
        %v1190 = vpack.c.b16 %v1179, %v1178
        %v1191 = vpack.c.b16 %v1181, %v1180
        %v1192 = vpack.c.b16 %v1183, %v1182
        %v1193 = vpack.c.b16 %v1185, %v1184
        %1202 = vmatpush.bf16.msra.mxu0 %v1193
        %1203 = vmatpush.bf16.msra.mxu0 %v1192
        %1204 = vmatpush.bf16.msra.mxu0 %v1191
        %1205 = vmatpush.bf16.msra.mxu0 %v1190
        %1206 = vmatpush.bf16.msra.mxu0 %v1189
        %1207 = vmatpush.bf16.msra.mxu0 %v1188
        %1208 = vmatpush.bf16.msra.mxu0 %v1187
        %1209 = vmatpush.bf16.msra.mxu0 %v1186
        %1210 = vmatmul.bf16.gmra.mxu0 %v1134
        %v1211 = vpop.f32.mrf.mxu0
        %v1212 = vadd.f32 %v1153, %v1211
        %v1213 = vpop.f32.mrf.mxu0
        %1214 = vdwg.mxu0
        %v1215 = vadd.f32 %v1212, %v1051
        %v1216 = vld [vmem:[#allocation9 + $0x9] sm:$0x1]
        %v1217 = vld [vmem:[#allocation9 + $0xa] sm:$0x1]
        %1218 = vadd.xlane.f32.xlu0 %v1215
        %v1219 = vpop.xlane.xlu0 %1218
        %v1220 = vmul.f32 %v1219, %v1029
        %v1221 = vsub.f32 %v1215, %v1220
        %v1222 = vmul.f32 %v1221, %v1221
        %1223 = vadd.xlane.f32.xlu0 %v1222
        %v1224 = vpop.xlane.xlu0 %1223
        %v1225 = vmul.f32 %v1224, %v1029
        %v1226 = vadd.f32 %v1225, 1e-05
        %v1227 = vrsqrt.pop %v1226
        %v1228 = vmul.f32 %v1227, %v1226
        %v1229 = vmul.f32 %v1228, %v1227
        %v1230 = vmul.f32 0.5, %v1229
        %v1231 = vsub.f32 1.5, %v1230
        %v1232 = vmul.f32 %v1227, %v1231
        %vm1233 = vweird.f32 %v1226
        %vm1234 = vweird.f32 %v1227
        %vm1235 = vmor %vm1233, %vm1234
        %v1236 = vsel %vm1235, %v1227, %v1232
        %v1237 = vmul.f32 %v1221, %v1236
        %v1238 = vperm.slane %v1216, 0
        %v1239 = vmul.f32 %v1237, %v1238
        %v1240 = vperm.slane %v1217, 0
        %v1241 = vadd.f32 %v1239, %v1240
        %v1242 = vld [vmem:[#allocation9 + $0xb] sm:$0x1]
        %v1243 = vld [vmem:[#allocation2] sm:$0x1]
        %1245 = vset.pattern.permute.xlu0 0
        %1246 = vperm.xlu0 %1245, %v1243
        %v1247 = vpop.permute.xlu0 %1246
        %v1249 = vperm.slane %v1247, 0
        %1250 = vmatpush.xpose.msra.mxu0 0.0
        %1251 = vmatpush.xpose.msra.mxu0 0.0
        %1252 = vmatpush.xpose.msra.mxu0 0.0
        %1253 = vmatpush.xpose.msra.mxu0 0.0
        %1254 = vmatpush.xpose.msra.mxu0 0.0
        %1255 = vmatpush.xpose.msra.mxu0 0.0
        %1256 = vmatpush.xpose.msra.mxu0 0.0
        %1257 = vmatpush.xpose.msra.mxu0 0.0
        %1258 = vmatpush.xpose.msra.mxu0 0.0
        %1259 = vmatpush.xpose.msra.mxu0 0.0
        %1260 = vmatpush.xpose.msra.mxu0 0.0
        %1261 = vmatpush.xpose.msra.mxu0 0.0
        %1262 = vmatpush.xpose.msra.mxu0 0.0
        %1263 = vmatpush.xpose.msra.mxu0 0.0
        %1264 = vmatpush.xpose.msra.mxu0 0.0
        %1265 = vmatpush.xpose.msra.mxu0 %v1241
        %1266 = vmatmul.f32.gmra.mxu0 %v1242
        %v1267 = vpop.f32.mrf.mxu0
        %v1268 = vadd.f32 %v1249, %v1267
        %1269 = vdwg.mxu0
        %v1270 = vxor.u32 %v1268, 2147483648
        %v1271 = vmul.f32 %v1270, 1.442695
        %v1272 = vpow.pop %v1271
        %v1273 = vadd.f32 %v1272, 1.0
        %v1274 = vrcp.pop %v1273
        %v1275 = vmul.f32 %v1273, %v1274
        %v1276 = vsub.f32 1.0, %v1275
        %v1277 = vmul.f32 %v1274, %v1276
        %v1278 = vadd.f32 %v1274, %v1277
        %vm1279 = vweird.f32 %v1273
        %vm1280 = vweird.f32 %v1274
        %vm1281 = vmor %vm1279, %vm1280
        %v1282 = vsel %vm1281, %v1274, %v1278
        %v1283 = vand.u32 2147483647, %v1273
        %vm1284 = vcmp.eq.f32.partialorder %v1283, 8.507059e+37
        %v1285 = vand.u32 %v1273, 2147483648
        %v1286 = vor.u32 1.1754944e-38, %v1285
        %v1287 = vsel %vm1284, %v1286, %v1282
        %v1288 = vmul.f32 1.0, %v1287
        %vm1289 = vcmask 57344
        %1290 = vst.msk [vmem:[%s314] sm:$0x1] %vm1289, %v1288
        %s1291 = sand.u32 %s151, 1
        %s1292 = scalar_lea.sflag [#allocation5], %s1291
        %s1293 = sand.u32 %s151, 1
        %s1294 = scalar_lea.vmem [#allocation11], %s1293
        // Predicated region
        $region57: #{tpu_custom_call.1} parent=39 // pred_check
          %p1295 = pneg %p161
        $region58: #{tpu_custom_call.1} parent=39 // pred_check_branch
          %1297 = sbr.rel (%p1295) target = $region60
        $region59: #{tpu_custom_call.1} parent=39 // pred_region
          %1299 = vsyncadd %s1292, 0
          %s1300 = scalar_lea.hbm %s5, %s28
          %s1302 = sshll.u32 %s1294, 4
          %s1303 = int_to_ptr.vmem [resolvable:$true] %s1302
          %s1304 = sshll.u32 %s1300, 4
          %s1305 = int_to_ptr.hbm [resolvable:$true] %s1304
          %1307 = dma.vmem_to_hbm [thread:$0]  %s1303, 16, %s1305, %s1292
        $region60: #{tpu_custom_call.1} parent=39 // pred_fallthru
          _
      $region40: #{tpu_custom_call.1} parent=5 // pred_fallthru
        _
      %p1308 = scmp.le.s32.totalorder 2, %s23
      // Predicated region
      $region61: #{tpu_custom_call.1} parent=5 // pred_check
        %p1309 = pneg %p1308
      $region62: #{tpu_custom_call.1} parent=5 // pred_check_branch
        %1311 = sbr.rel (%p1309) target = $region64
      $region63: #{tpu_custom_call.1} parent=5 // pred_region
        %s1312 = ssub.s32 %s23, 2
        // Predicated region
        $region65: #{tpu_custom_call.1} parent=63 // pred_check
          %p1313 = pneg %p167
        $region66: #{tpu_custom_call.1} parent=63 // pred_check_branch
          %1315 = sbr.rel (%p1313) target = $region68
        $region67: #{tpu_custom_call.1} parent=63 // pred_region
          %s1316 = sand.u32 %s152, 1
          %s1317 = scalar_lea.sflag [#allocation5], %s1316
          %s1318 = sand.u32 %s152, 1
          %s1319 = scalar_lea.vmem [#allocation11], %s1318
          %1321 = dma.done %s1317, 16
        $region68: #{tpu_custom_call.1} parent=63 // pred_fallthru
          _
      $region64: #{tpu_custom_call.1} parent=5 // pred_fallthru
        _
    $region6: #{tpu_custom_call.1} parent=1 // loop_footer
      %s27 = sadd.s32 1, %s23
    $region7: #{tpu_custom_call.1} parent=1 // loop_footer_branch
      %22 = sbr.rel target = $region3
    $region8: #{tpu_custom_call.1} parent=1 // loop_exit
      _
    %1322 = vsyncpa [#allocation4], 1
    %s1323 = scalar_lea.sflag [#allocation4], 1
    %1324 = vsyncpa %s1323, 1
    %1325 = vsyncpa [#allocation7], 1
    %s1326 = scalar_lea.sflag [#allocation7], 1
    %1327 = vsyncpa %s1326, 1
    %1328 = vsyncpa [#allocation10], 1
    %1329 = vsyncpa [#allocation5], 1
    %s1330 = scalar_lea.sflag [#allocation5], 1
    %1331 = vsyncpa %s1330, 1

</llo_original>
